<compile_context>
chip_gen: v7x
topology: tpu7x:2x2x1
jax: 0.10.0
libtpu: 0.0.40
codegen_flags: <defaults>
</compile_context>

<pallas_src>
from functools import partial

import jax
import jax.numpy as jnp
from jax import lax
from jax.experimental import pallas as pl
from jax.experimental.pallas import tpu as pltpu  # noqa: F401  (kept for TODOs above)


def lstm_head_kernel(x_ref,      # (T, B, D_in)       bf16 (time-major)
                     wih_ref,    # (D_in, 4H)         bf16 (= W_ih^T, gate order i,f,g,o)
                     whh_ref,    # (H, 4H)            bf16 (= W_hh^T)
                     b_ref,      # (1, 4H)            f32  (= b_ih + b_hh)
                     wout_ref,   # (H, D_out)         bf16 (= W_out^T)
                     bout_ref,   # (1, D_out)         f32
                     wcls_ref,   # (D_out, Ncls_pad)  bf16 (= W_cls^T, zero padded)
                     bcls_ref,   # (1, Ncls_pad)      f32  (zero padded)
                     out_ref):   # (B, Ncls_pad)      f32
    T, B, _ = x_ref.shape
    H = whh_ref.shape[0]

    # sigmoid(x) == 0.5*(tanh(0.5*x)+1): one EUP transcendental, no exp/recip/select.
    def sigm(z):
        return 0.5 * jnp.tanh(0.5 * z) + 0.5

    b = b_ref[...]                                   # (1, 4H) f32

    h = jnp.zeros((B, H), jnp.bfloat16)
    c = jnp.zeros((B, H), jnp.float32)

    # Fully unrolled recurrence (T is a small static trip count).  The per-step
    # input projection depends only on x_ref[t], so it can be scheduled into the
    # MXU/EUP latency bubbles of the serial h @ W_hh chain.
    for t in range(T):
        xg_t = jnp.dot(x_ref[t], wih_ref[...],
                       preferred_element_type=jnp.float32) + b          # (B, 4H)
        gates = xg_t + jnp.dot(h, whh_ref[...],
                               preferred_element_type=jnp.float32)      # (B, 4H)
        i = sigm(gates[:, 0 * H:1 * H])
        f = sigm(gates[:, 1 * H:2 * H])
        g = jnp.tanh(gates[:, 2 * H:3 * H])
        o = sigm(gates[:, 3 * H:4 * H])
        c = f * c + i * g
        h = (o * jnp.tanh(c)).astype(jnp.bfloat16)                      # bf16 carry

    # ---- output head: Linear -> swish -> classifier Linear (lane-dense) ----
    y = jnp.dot(h, wout_ref[...],
                preferred_element_type=jnp.float32) + bout_ref[...]     # (B, D_out)
    y = y * sigm(y)                                                     # swish
    logits = jnp.dot(y.astype(jnp.bfloat16), wcls_ref[...],
                     preferred_element_type=jnp.float32) + bcls_ref[...]
    out_ref[...] = logits.astype(out_ref.dtype)


def _full_spec(shape):
    n = len(shape)
    return pl.BlockSpec(shape, lambda *_, _n=n: (0,) * _n)


def prepare_params(params):
    """One-time weight preprocessing, hoisted out of the per-call jitted path."""
    (w_ih, w_hh, b_ih, b_hh, w_out, b_out, w_cls, b_cls) = params
    H = w_hh.shape[1]
    D_out = w_out.shape[0]
    n_cls = w_cls.shape[0]
    n_cls_pad = pl.cdiv(n_cls, 128) * 128                         # lane-dense output

    wih_t = w_ih.T.astype(jnp.bfloat16)                           # (D_in, 4H)
    whh_t = w_hh.T.astype(jnp.bfloat16)                           # (H, 4H)
    b = (b_ih + b_hh).reshape(1, 4 * H).astype(jnp.float32)
    wout_t = w_out.T.astype(jnp.bfloat16)                         # (H, D_out)
    bout = b_out.reshape(1, D_out).astype(jnp.float32)
    wcls_pad = jnp.zeros((D_out, n_cls_pad), jnp.bfloat16).at[:, :n_cls].set(
        w_cls.T.astype(jnp.bfloat16))                             # (D_out, 128)
    bcls_pad = jnp.zeros((1, n_cls_pad), jnp.float32).at[:, :n_cls].set(
        b_cls.astype(jnp.float32))
    return (wih_t, whh_t, b, wout_t, bout, wcls_pad, bcls_pad)


@partial(jax.jit, static_argnames=("n_classes",))
def lstm_model_forward(x, prepped, n_classes=40):
    """x: (B, T, D_in) float32, prepped: prepare_params(...). Returns (B, n_classes) f32."""
    (wih_t, whh_t, b, wout_t, bout, wcls_pad, bcls_pad) = prepped
    B, T, D_in = x.shape
    n_cls_pad = wcls_pad.shape[1]

    # Single small XLA op on the per-call data: time-major relayout + bf16 cast
    # (gives aligned full-tile (B, D_in) loads per recurrence step in-kernel).
    x_tbd = jnp.transpose(x, (1, 0, 2)).astype(jnp.bfloat16)      # (T, B, D_in)

    inputs = (x_tbd, wih_t, whh_t, b, wout_t, bout, wcls_pad, bcls_pad)
    out_pad = pl.pallas_call(
        lstm_head_kernel,
        out_shape=jax.ShapeDtypeStruct((B, n_cls_pad), jnp.float32),
        in_specs=[_full_spec(a.shape) for a in inputs],
        out_specs=_full_spec((B, n_cls_pad)),
    )(*inputs)
    return out_pad[:, :n_classes]


def init_params(key, input_size=128, lstm_size=128, output_size=128, n_classes=40):
    """Deterministic init matching the PyTorch module's parameter shapes."""
    ks = jax.random.split(key, 8)
    k = 1.0 / jnp.sqrt(lstm_size)
    u = lambda kk, shape, s: jax.random.uniform(kk, shape, jnp.float32, -s, s)
    w_ih = u(ks[0], (4 * lstm_size, input_size), k)    # nn.LSTM weight_ih_l0
    w_hh = u(ks[1], (4 * lstm_size, lstm_size), k)     # nn.LSTM weight_hh_l0
    b_ih = u(ks[2], (4 * lstm_size,), k)
    b_hh = u(ks[3], (4 * lstm_size,), k)
    ko = 1.0 / jnp.sqrt(lstm_size)
    w_out = u(ks[4], (output_size, lstm_size), ko)     # nn.Linear(lstm_size, output_size)
    b_out = u(ks[5], (output_size,), ko)
    kc = 1.0 / jnp.sqrt(output_size)
    w_cls = u(ks[6], (n_classes, output_size), kc)     # nn.Linear(output_size, 40)
    b_cls = u(ks[7], (n_classes,), kc)
    return (w_ih, w_hh, b_ih, b_hh, w_out, b_out, w_cls, b_cls)


def reference_forward(x, params):
    """Pure-JAX f32 reference (mirrors PyTorch LSTM semantics, zero init states)."""
    (w_ih, w_hh, b_ih, b_hh, w_out, b_out, w_cls, b_cls) = params
    B, T, _ = x.shape
    H = w_hh.shape[1]

    def step(carry, x_t):
        h, c = carry
        gates = x_t @ w_ih.T + h @ w_hh.T + b_ih + b_hh
        i, f, g, o = jnp.split(gates, 4, axis=-1)
        c = jax.nn.sigmoid(f) * c + jax.nn.sigmoid(i) * jnp.tanh(g)
        h = jax.nn.sigmoid(o) * jnp.tanh(c)
        return (h, c), None

    h0 = jnp.zeros((B, H), jnp.float32)
    (h, _), _ = lax.scan(step, (h0, h0), jnp.transpose(x, (1, 0, 2)))
    y = h @ w_out.T + b_out
    y = y * jax.nn.sigmoid(y)
    return y @ w_cls.T + b_cls


if __name__ == "__main__":
    key = jax.random.PRNGKey(0)
    k_x, k_p = jax.random.split(key)

    B, T, D_in = 8, 8, 128                      # small shapes consistent with defaults
    x = jax.random.normal(k_x, (B, T, D_in), jnp.float32)
    params = init_params(k_p, input_size=D_in, lstm_size=128, output_size=128)
    prepped = prepare_params(params)            # one-time weight prep (not per call)

    out = lstm_model_forward(x, prepped)
    out = jax.block_until_ready(out)

    ref = reference_forward(x, params)
    assert out.shape == (B, 40)
    # bf16 activations/weights (f32 accumulate) -> relaxed tolerance vs f32 reference
    err = jnp.max(jnp.abs(out - ref))
    assert jnp.allclose(out, ref, atol=5e-2, rtol=5e-2), f"max err {err}"

    print("KERNEL_OK")
</pallas_src>

<mosaic_0001>
module attributes {stable_mosaic.version = 11 : i64} {
  func.func @lstm_head_kernel(%arg0: memref<8x8x128xbf16, #tpu.memory_space<vmem>>, %arg1: memref<128x512xbf16, #tpu.memory_space<vmem>>, %arg2: memref<128x512xbf16, #tpu.memory_space<vmem>>, %arg3: memref<1x512xf32, #tpu.memory_space<vmem>>, %arg4: memref<128x128xbf16, #tpu.memory_space<vmem>>, %arg5: memref<1x128xf32, #tpu.memory_space<vmem>>, %arg6: memref<128x128xbf16, #tpu.memory_space<vmem>>, %arg7: memref<1x128xf32, #tpu.memory_space<vmem>>, %arg8: memref<8x128xf32, #tpu.memory_space<vmem>>) attributes {dimension_semantics = [], scalar_prefetch = 0 : i64, scratch_operands = 0 : i64, tpu.core_type = #tpu.core_type<tc>} {
    %c0 = arith.constant 0 : index
    %c0_0 = arith.constant 0 : index
    %0 = vector.load %arg3[%c0, %c0_0] : memref<1x512xf32, #tpu.memory_space<vmem>>, vector<1x512xf32>
    %cst = arith.constant 0.000000e+00 : bf16
    %1 = vector.broadcast %cst : bf16 to vector<8x128xbf16>
    %cst_1 = arith.constant 0.000000e+00 : f32
    %2 = vector.broadcast %cst_1 : f32 to vector<8x128xf32>
    %c0_2 = arith.constant 0 : index
    %c0_3 = arith.constant 0 : index
    %c0_4 = arith.constant 0 : index
    %3 = vector.load %arg0[%c0_2, %c0_3, %c0_4] : memref<8x8x128xbf16, #tpu.memory_space<vmem>>, vector<1x8x128xbf16>
    %4 = vector.shape_cast %3 : vector<1x8x128xbf16> to vector<8x128xbf16>
    %c0_5 = arith.constant 0 : index
    %c0_6 = arith.constant 0 : index
    %5 = vector.load %arg1[%c0_5, %c0_6] : memref<128x512xbf16, #tpu.memory_space<vmem>>, vector<128x512xbf16>
    %cst_7 = arith.constant dense<0.000000e+00> : vector<8x512xf32>
    %6 = tpu.matmul %4, %5, %cst_7 {dimension_numbers = #tpu.dot_dimension_numbers<[1], [0], [0], [1], [0, 0, 1, 1], [], []>} : vector<8x128xbf16>, vector<128x512xbf16>, vector<8x512xf32> -> vector<8x512xf32>
    %7 = vector.broadcast %0 : vector<1x512xf32> to vector<8x512xf32>
    %8 = arith.addf %6, %7 : vector<8x512xf32>
    %c0_8 = arith.constant 0 : index
    %c0_9 = arith.constant 0 : index
    %9 = vector.load %arg2[%c0_8, %c0_9] : memref<128x512xbf16, #tpu.memory_space<vmem>>, vector<128x512xbf16>
    %cst_10 = arith.constant dense<0.000000e+00> : vector<8x512xf32>
    %10 = tpu.matmul %1, %9, %cst_10 {dimension_numbers = #tpu.dot_dimension_numbers<[1], [0], [0], [1], [0, 0, 1, 1], [], []>} : vector<8x128xbf16>, vector<128x512xbf16>, vector<8x512xf32> -> vector<8x512xf32>
    %11 = arith.addf %8, %10 : vector<8x512xf32>
    %12 = vector.extract_strided_slice %11 {offsets = [0, 0], sizes = [8, 128], strides = [1, 1]} : vector<8x512xf32> to vector<8x128xf32>
    %cst_11 = arith.constant 5.000000e-01 : f32
    %13 = vector.broadcast %cst_11 : f32 to vector<8x128xf32>
    %14 = arith.mulf %13, %12 : vector<8x128xf32>
    %15 = math.tanh %14 : vector<8x128xf32>
    %cst_12 = arith.constant 5.000000e-01 : f32
    %16 = vector.broadcast %cst_12 : f32 to vector<8x128xf32>
    %17 = arith.mulf %16, %15 : vector<8x128xf32>
    %cst_13 = arith.constant 5.000000e-01 : f32
    %18 = vector.broadcast %cst_13 : f32 to vector<8x128xf32>
    %19 = arith.addf %17, %18 : vector<8x128xf32>
    %20 = vector.extract_strided_slice %11 {offsets = [0, 128], sizes = [8, 128], strides = [1, 1]} : vector<8x512xf32> to vector<8x128xf32>
    %cst_14 = arith.constant 5.000000e-01 : f32
    %21 = vector.broadcast %cst_14 : f32 to vector<8x128xf32>
    %22 = arith.mulf %21, %20 : vector<8x128xf32>
    %23 = math.tanh %22 : vector<8x128xf32>
    %cst_15 = arith.constant 5.000000e-01 : f32
    %24 = vector.broadcast %cst_15 : f32 to vector<8x128xf32>
    %25 = arith.mulf %24, %23 : vector<8x128xf32>
    %cst_16 = arith.constant 5.000000e-01 : f32
    %26 = vector.broadcast %cst_16 : f32 to vector<8x128xf32>
    %27 = arith.addf %25, %26 : vector<8x128xf32>
    %28 = vector.extract_strided_slice %11 {offsets = [0, 256], sizes = [8, 128], strides = [1, 1]} : vector<8x512xf32> to vector<8x128xf32>
    %29 = math.tanh %28 : vector<8x128xf32>
    %30 = vector.extract_strided_slice %11 {offsets = [0, 384], sizes = [8, 128], strides = [1, 1]} : vector<8x512xf32> to vector<8x128xf32>
    %cst_17 = arith.constant 5.000000e-01 : f32
    %31 = vector.broadcast %cst_17 : f32 to vector<8x128xf32>
    %32 = arith.mulf %31, %30 : vector<8x128xf32>
    %33 = math.tanh %32 : vector<8x128xf32>
    %cst_18 = arith.constant 5.000000e-01 : f32
    %34 = vector.broadcast %cst_18 : f32 to vector<8x128xf32>
    %35 = arith.mulf %34, %33 : vector<8x128xf32>
    %cst_19 = arith.constant 5.000000e-01 : f32
    %36 = vector.broadcast %cst_19 : f32 to vector<8x128xf32>
    %37 = arith.addf %35, %36 : vector<8x128xf32>
    %38 = arith.mulf %27, %2 : vector<8x128xf32>
    %39 = arith.mulf %19, %29 : vector<8x128xf32>
    %40 = arith.addf %38, %39 : vector<8x128xf32>
    %41 = math.tanh %40 : vector<8x128xf32>
    %42 = arith.mulf %37, %41 : vector<8x128xf32>
    %43 = arith.truncf %42 : vector<8x128xf32> to vector<8x128xbf16>
    %c1 = arith.constant 1 : index
    %c0_20 = arith.constant 0 : index
    %c0_21 = arith.constant 0 : index
    %44 = vector.load %arg0[%c1, %c0_20, %c0_21] : memref<8x8x128xbf16, #tpu.memory_space<vmem>>, vector<1x8x128xbf16>
    %45 = vector.shape_cast %44 : vector<1x8x128xbf16> to vector<8x128xbf16>
    %c0_22 = arith.constant 0 : index
    %c0_23 = arith.constant 0 : index
    %46 = vector.load %arg1[%c0_22, %c0_23] : memref<128x512xbf16, #tpu.memory_space<vmem>>, vector<128x512xbf16>
    %cst_24 = arith.constant dense<0.000000e+00> : vector<8x512xf32>
    %47 = tpu.matmul %45, %46, %cst_24 {dimension_numbers = #tpu.dot_dimension_numbers<[1], [0], [0], [1], [0, 0, 1, 1], [], []>} : vector<8x128xbf16>, vector<128x512xbf16>, vector<8x512xf32> -> vector<8x512xf32>
    %48 = vector.broadcast %0 : vector<1x512xf32> to vector<8x512xf32>
    %49 = arith.addf %47, %48 : vector<8x512xf32>
    %c0_25 = arith.constant 0 : index
    %c0_26 = arith.constant 0 : index
    %50 = vector.load %arg2[%c0_25, %c0_26] : memref<128x512xbf16, #tpu.memory_space<vmem>>, vector<128x512xbf16>
    %cst_27 = arith.constant dense<0.000000e+00> : vector<8x512xf32>
    %51 = tpu.matmul %43, %50, %cst_27 {dimension_numbers = #tpu.dot_dimension_numbers<[1], [0], [0], [1], [0, 0, 1, 1], [], []>} : vector<8x128xbf16>, vector<128x512xbf16>, vector<8x512xf32> -> vector<8x512xf32>
    %52 = arith.addf %49, %51 : vector<8x512xf32>
    %53 = vector.extract_strided_slice %52 {offsets = [0, 0], sizes = [8, 128], strides = [1, 1]} : vector<8x512xf32> to vector<8x128xf32>
    %cst_28 = arith.constant 5.000000e-01 : f32
    %54 = vector.broadcast %cst_28 : f32 to vector<8x128xf32>
    %55 = arith.mulf %54, %53 : vector<8x128xf32>
    %56 = math.tanh %55 : vector<8x128xf32>
    %cst_29 = arith.constant 5.000000e-01 : f32
    %57 = vector.broadcast %cst_29 : f32 to vector<8x128xf32>
    %58 = arith.mulf %57, %56 : vector<8x128xf32>
    %cst_30 = arith.constant 5.000000e-01 : f32
    %59 = vector.broadcast %cst_30 : f32 to vector<8x128xf32>
    %60 = arith.addf %58, %59 : vector<8x128xf32>
    %61 = vector.extract_strided_slice %52 {offsets = [0, 128], sizes = [8, 128], strides = [1, 1]} : vector<8x512xf32> to vector<8x128xf32>
    %cst_31 = arith.constant 5.000000e-01 : f32
    %62 = vector.broadcast %cst_31 : f32 to vector<8x128xf32>
    %63 = arith.mulf %62, %61 : vector<8x128xf32>
    %64 = math.tanh %63 : vector<8x128xf32>
    %cst_32 = arith.constant 5.000000e-01 : f32
    %65 = vector.broadcast %cst_32 : f32 to vector<8x128xf32>
    %66 = arith.mulf %65, %64 : vector<8x128xf32>
    %cst_33 = arith.constant 5.000000e-01 : f32
    %67 = vector.broadcast %cst_33 : f32 to vector<8x128xf32>
    %68 = arith.addf %66, %67 : vector<8x128xf32>
    %69 = vector.extract_strided_slice %52 {offsets = [0, 256], sizes = [8, 128], strides = [1, 1]} : vector<8x512xf32> to vector<8x128xf32>
    %70 = math.tanh %69 : vector<8x128xf32>
    %71 = vector.extract_strided_slice %52 {offsets = [0, 384], sizes = [8, 128], strides = [1, 1]} : vector<8x512xf32> to vector<8x128xf32>
    %cst_34 = arith.constant 5.000000e-01 : f32
    %72 = vector.broadcast %cst_34 : f32 to vector<8x128xf32>
    %73 = arith.mulf %72, %71 : vector<8x128xf32>
    %74 = math.tanh %73 : vector<8x128xf32>
    %cst_35 = arith.constant 5.000000e-01 : f32
    %75 = vector.broadcast %cst_35 : f32 to vector<8x128xf32>
    %76 = arith.mulf %75, %74 : vector<8x128xf32>
    %cst_36 = arith.constant 5.000000e-01 : f32
    %77 = vector.broadcast %cst_36 : f32 to vector<8x128xf32>
    %78 = arith.addf %76, %77 : vector<8x128xf32>
    %79 = arith.mulf %68, %40 : vector<8x128xf32>
    %80 = arith.mulf %60, %70 : vector<8x128xf32>
    %81 = arith.addf %79, %80 : vector<8x128xf32>
    %82 = math.tanh %81 : vector<8x128xf32>
    %83 = arith.mulf %78, %82 : vector<8x128xf32>
    %84 = arith.truncf %83 : vector<8x128xf32> to vector<8x128xbf16>
    %c2 = arith.constant 2 : index
    %c0_37 = arith.constant 0 : index
    %c0_38 = arith.constant 0 : index
    %85 = vector.load %arg0[%c2, %c0_37, %c0_38] : memref<8x8x128xbf16, #tpu.memory_space<vmem>>, vector<1x8x128xbf16>
    %86 = vector.shape_cast %85 : vector<1x8x128xbf16> to vector<8x128xbf16>
    %c0_39 = arith.constant 0 : index
    %c0_40 = arith.constant 0 : index
    %87 = vector.load %arg1[%c0_39, %c0_40] : memref<128x512xbf16, #tpu.memory_space<vmem>>, vector<128x512xbf16>
    %cst_41 = arith.constant dense<0.000000e+00> : vector<8x512xf32>
    %88 = tpu.matmul %86, %87, %cst_41 {dimension_numbers = #tpu.dot_dimension_numbers<[1], [0], [0], [1], [0, 0, 1, 1], [], []>} : vector<8x128xbf16>, vector<128x512xbf16>, vector<8x512xf32> -> vector<8x512xf32>
    %89 = vector.broadcast %0 : vector<1x512xf32> to vector<8x512xf32>
    %90 = arith.addf %88, %89 : vector<8x512xf32>
    %c0_42 = arith.constant 0 : index
    %c0_43 = arith.constant 0 : index
    %91 = vector.load %arg2[%c0_42, %c0_43] : memref<128x512xbf16, #tpu.memory_space<vmem>>, vector<128x512xbf16>
    %cst_44 = arith.constant dense<0.000000e+00> : vector<8x512xf32>
    %92 = tpu.matmul %84, %91, %cst_44 {dimension_numbers = #tpu.dot_dimension_numbers<[1], [0], [0], [1], [0, 0, 1, 1], [], []>} : vector<8x128xbf16>, vector<128x512xbf16>, vector<8x512xf32> -> vector<8x512xf32>
    %93 = arith.addf %90, %92 : vector<8x512xf32>
    %94 = vector.extract_strided_slice %93 {offsets = [0, 0], sizes = [8, 128], strides = [1, 1]} : vector<8x512xf32> to vector<8x128xf32>
    %cst_45 = arith.constant 5.000000e-01 : f32
    %95 = vector.broadcast %cst_45 : f32 to vector<8x128xf32>
    %96 = arith.mulf %95, %94 : vector<8x128xf32>
    %97 = math.tanh %96 : vector<8x128xf32>
    %cst_46 = arith.constant 5.000000e-01 : f32
    %98 = vector.broadcast %cst_46 : f32 to vector<8x128xf32>
    %99 = arith.mulf %98, %97 : vector<8x128xf32>
    %cst_47 = arith.constant 5.000000e-01 : f32
    %100 = vector.broadcast %cst_47 : f32 to vector<8x128xf32>
    %101 = arith.addf %99, %100 : vector<8x128xf32>
    %102 = vector.extract_strided_slice %93 {offsets = [0, 128], sizes = [8, 128], strides = [1, 1]} : vector<8x512xf32> to vector<8x128xf32>
    %cst_48 = arith.constant 5.000000e-01 : f32
    %103 = vector.broadcast %cst_48 : f32 to vector<8x128xf32>
    %104 = arith.mulf %103, %102 : vector<8x128xf32>
    %105 = math.tanh %104 : vector<8x128xf32>
    %cst_49 = arith.constant 5.000000e-01 : f32
    %106 = vector.broadcast %cst_49 : f32 to vector<8x128xf32>
    %107 = arith.mulf %106, %105 : vector<8x128xf32>
    %cst_50 = arith.constant 5.000000e-01 : f32
    %108 = vector.broadcast %cst_50 : f32 to vector<8x128xf32>
    %109 = arith.addf %107, %108 : vector<8x128xf32>
    %110 = vector.extract_strided_slice %93 {offsets = [0, 256], sizes = [8, 128], strides = [1, 1]} : vector<8x512xf32> to vector<8x128xf32>
    %111 = math.tanh %110 : vector<8x128xf32>
    %112 = vector.extract_strided_slice %93 {offsets = [0, 384], sizes = [8, 128], strides = [1, 1]} : vector<8x512xf32> to vector<8x128xf32>
    %cst_51 = arith.constant 5.000000e-01 : f32
    %113 = vector.broadcast %cst_51 : f32 to vector<8x128xf32>
    %114 = arith.mulf %113, %112 : vector<8x128xf32>
    %115 = math.tanh %114 : vector<8x128xf32>
    %cst_52 = arith.constant 5.000000e-01 : f32
    %116 = vector.broadcast %cst_52 : f32 to vector<8x128xf32>
    %117 = arith.mulf %116, %115 : vector<8x128xf32>
    %cst_53 = arith.constant 5.000000e-01 : f32
    %118 = vector.broadcast %cst_53 : f32 to vector<8x128xf32>
    %119 = arith.addf %117, %118 : vector<8x128xf32>
    %120 = arith.mulf %109, %81 : vector<8x128xf32>
    %121 = arith.mulf %101, %111 : vector<8x128xf32>
    %122 = arith.addf %120, %121 : vector<8x128xf32>
    %123 = math.tanh %122 : vector<8x128xf32>
    %124 = arith.mulf %119, %123 : vector<8x128xf32>
    %125 = arith.truncf %124 : vector<8x128xf32> to vector<8x128xbf16>
    %c3 = arith.constant 3 : index
    %c0_54 = arith.constant 0 : index
    %c0_55 = arith.constant 0 : index
    %126 = vector.load %arg0[%c3, %c0_54, %c0_55] : memref<8x8x128xbf16, #tpu.memory_space<vmem>>, vector<1x8x128xbf16>
    %127 = vector.shape_cast %126 : vector<1x8x128xbf16> to vector<8x128xbf16>
    %c0_56 = arith.constant 0 : index
    %c0_57 = arith.constant 0 : index
    %128 = vector.load %arg1[%c0_56, %c0_57] : memref<128x512xbf16, #tpu.memory_space<vmem>>, vector<128x512xbf16>
    %cst_58 = arith.constant dense<0.000000e+00> : vector<8x512xf32>
    %129 = tpu.matmul %127, %128, %cst_58 {dimension_numbers = #tpu.dot_dimension_numbers<[1], [0], [0], [1], [0, 0, 1, 1], [], []>} : vector<8x128xbf16>, vector<128x512xbf16>, vector<8x512xf32> -> vector<8x512xf32>
    %130 = vector.broadcast %0 : vector<1x512xf32> to vector<8x512xf32>
    %131 = arith.addf %129, %130 : vector<8x512xf32>
    %c0_59 = arith.constant 0 : index
    %c0_60 = arith.constant 0 : index
    %132 = vector.load %arg2[%c0_59, %c0_60] : memref<128x512xbf16, #tpu.memory_space<vmem>>, vector<128x512xbf16>
    %cst_61 = arith.constant dense<0.000000e+00> : vector<8x512xf32>
    %133 = tpu.matmul %125, %132, %cst_61 {dimension_numbers = #tpu.dot_dimension_numbers<[1], [0], [0], [1], [0, 0, 1, 1], [], []>} : vector<8x128xbf16>, vector<128x512xbf16>, vector<8x512xf32> -> vector<8x512xf32>
    %134 = arith.addf %131, %133 : vector<8x512xf32>
    %135 = vector.extract_strided_slice %134 {offsets = [0, 0], sizes = [8, 128], strides = [1, 1]} : vector<8x512xf32> to vector<8x128xf32>
    %cst_62 = arith.constant 5.000000e-01 : f32
    %136 = vector.broadcast %cst_62 : f32 to vector<8x128xf32>
    %137 = arith.mulf %136, %135 : vector<8x128xf32>
    %138 = math.tanh %137 : vector<8x128xf32>
    %cst_63 = arith.constant 5.000000e-01 : f32
    %139 = vector.broadcast %cst_63 : f32 to vector<8x128xf32>
    %140 = arith.mulf %139, %138 : vector<8x128xf32>
    %cst_64 = arith.constant 5.000000e-01 : f32
    %141 = vector.broadcast %cst_64 : f32 to vector<8x128xf32>
    %142 = arith.addf %140, %141 : vector<8x128xf32>
    %143 = vector.extract_strided_slice %134 {offsets = [0, 128], sizes = [8, 128], strides = [1, 1]} : vector<8x512xf32> to vector<8x128xf32>
    %cst_65 = arith.constant 5.000000e-01 : f32
    %144 = vector.broadcast %cst_65 : f32 to vector<8x128xf32>
    %145 = arith.mulf %144, %143 : vector<8x128xf32>
    %146 = math.tanh %145 : vector<8x128xf32>
    %cst_66 = arith.constant 5.000000e-01 : f32
    %147 = vector.broadcast %cst_66 : f32 to vector<8x128xf32>
    %148 = arith.mulf %147, %146 : vector<8x128xf32>
    %cst_67 = arith.constant 5.000000e-01 : f32
    %149 = vector.broadcast %cst_67 : f32 to vector<8x128xf32>
    %150 = arith.addf %148, %149 : vector<8x128xf32>
    %151 = vector.extract_strided_slice %134 {offsets = [0, 256], sizes = [8, 128], strides = [1, 1]} : vector<8x512xf32> to vector<8x128xf32>
    %152 = math.tanh %151 : vector<8x128xf32>
    %153 = vector.extract_strided_slice %134 {offsets = [0, 384], sizes = [8, 128], strides = [1, 1]} : vector<8x512xf32> to vector<8x128xf32>
    %cst_68 = arith.constant 5.000000e-01 : f32
    %154 = vector.broadcast %cst_68 : f32 to vector<8x128xf32>
    %155 = arith.mulf %154, %153 : vector<8x128xf32>
    %156 = math.tanh %155 : vector<8x128xf32>
    %cst_69 = arith.constant 5.000000e-01 : f32
    %157 = vector.broadcast %cst_69 : f32 to vector<8x128xf32>
    %158 = arith.mulf %157, %156 : vector<8x128xf32>
    %cst_70 = arith.constant 5.000000e-01 : f32
    %159 = vector.broadcast %cst_70 : f32 to vector<8x128xf32>
    %160 = arith.addf %158, %159 : vector<8x128xf32>
    %161 = arith.mulf %150, %122 : vector<8x128xf32>
    %162 = arith.mulf %142, %152 : vector<8x128xf32>
    %163 = arith.addf %161, %162 : vector<8x128xf32>
    %164 = math.tanh %163 : vector<8x128xf32>
    %165 = arith.mulf %160, %164 : vector<8x128xf32>
    %166 = arith.truncf %165 : vector<8x128xf32> to vector<8x128xbf16>
    %c4 = arith.constant 4 : index
    %c0_71 = arith.constant 0 : index
    %c0_72 = arith.constant 0 : index
    %167 = vector.load %arg0[%c4, %c0_71, %c0_72] : memref<8x8x128xbf16, #tpu.memory_space<vmem>>, vector<1x8x128xbf16>
    %168 = vector.shape_cast %167 : vector<1x8x128xbf16> to vector<8x128xbf16>
    %c0_73 = arith.constant 0 : index
    %c0_74 = arith.constant 0 : index
    %169 = vector.load %arg1[%c0_73, %c0_74] : memref<128x512xbf16, #tpu.memory_space<vmem>>, vector<128x512xbf16>
    %cst_75 = arith.constant dense<0.000000e+00> : vector<8x512xf32>
    %170 = tpu.matmul %168, %169, %cst_75 {dimension_numbers = #tpu.dot_dimension_numbers<[1], [0], [0], [1], [0, 0, 1, 1], [], []>} : vector<8x128xbf16>, vector<128x512xbf16>, vector<8x512xf32> -> vector<8x512xf32>
    %171 = vector.broadcast %0 : vector<1x512xf32> to vector<8x512xf32>
    %172 = arith.addf %170, %171 : vector<8x512xf32>
    %c0_76 = arith.constant 0 : index
    %c0_77 = arith.constant 0 : index
    %173 = vector.load %arg2[%c0_76, %c0_77] : memref<128x512xbf16, #tpu.memory_space<vmem>>, vector<128x512xbf16>
    %cst_78 = arith.constant dense<0.000000e+00> : vector<8x512xf32>
    %174 = tpu.matmul %166, %173, %cst_78 {dimension_numbers = #tpu.dot_dimension_numbers<[1], [0], [0], [1], [0, 0, 1, 1], [], []>} : vector<8x128xbf16>, vector<128x512xbf16>, vector<8x512xf32> -> vector<8x512xf32>
    %175 = arith.addf %172, %174 : vector<8x512xf32>
    %176 = vector.extract_strided_slice %175 {offsets = [0, 0], sizes = [8, 128], strides = [1, 1]} : vector<8x512xf32> to vector<8x128xf32>
    %cst_79 = arith.constant 5.000000e-01 : f32
    %177 = vector.broadcast %cst_79 : f32 to vector<8x128xf32>
    %178 = arith.mulf %177, %176 : vector<8x128xf32>
    %179 = math.tanh %178 : vector<8x128xf32>
    %cst_80 = arith.constant 5.000000e-01 : f32
    %180 = vector.broadcast %cst_80 : f32 to vector<8x128xf32>
    %181 = arith.mulf %180, %179 : vector<8x128xf32>
    %cst_81 = arith.constant 5.000000e-01 : f32
    %182 = vector.broadcast %cst_81 : f32 to vector<8x128xf32>
    %183 = arith.addf %181, %182 : vector<8x128xf32>
    %184 = vector.extract_strided_slice %175 {offsets = [0, 128], sizes = [8, 128], strides = [1, 1]} : vector<8x512xf32> to vector<8x128xf32>
    %cst_82 = arith.constant 5.000000e-01 : f32
    %185 = vector.broadcast %cst_82 : f32 to vector<8x128xf32>
    %186 = arith.mulf %185, %184 : vector<8x128xf32>
    %187 = math.tanh %186 : vector<8x128xf32>
    %cst_83 = arith.constant 5.000000e-01 : f32
    %188 = vector.broadcast %cst_83 : f32 to vector<8x128xf32>
    %189 = arith.mulf %188, %187 : vector<8x128xf32>
    %cst_84 = arith.constant 5.000000e-01 : f32
    %190 = vector.broadcast %cst_84 : f32 to vector<8x128xf32>
    %191 = arith.addf %189, %190 : vector<8x128xf32>
    %192 = vector.extract_strided_slice %175 {offsets = [0, 256], sizes = [8, 128], strides = [1, 1]} : vector<8x512xf32> to vector<8x128xf32>
    %193 = math.tanh %192 : vector<8x128xf32>
    %194 = vector.extract_strided_slice %175 {offsets = [0, 384], sizes = [8, 128], strides = [1, 1]} : vector<8x512xf32> to vector<8x128xf32>
    %cst_85 = arith.constant 5.000000e-01 : f32
    %195 = vector.broadcast %cst_85 : f32 to vector<8x128xf32>
    %196 = arith.mulf %195, %194 : vector<8x128xf32>
    %197 = math.tanh %196 : vector<8x128xf32>
    %cst_86 = arith.constant 5.000000e-01 : f32
    %198 = vector.broadcast %cst_86 : f32 to vector<8x128xf32>
    %199 = arith.mulf %198, %197 : vector<8x128xf32>
    %cst_87 = arith.constant 5.000000e-01 : f32
    %200 = vector.broadcast %cst_87 : f32 to vector<8x128xf32>
    %201 = arith.addf %199, %200 : vector<8x128xf32>
    %202 = arith.mulf %191, %163 : vector<8x128xf32>
    %203 = arith.mulf %183, %193 : vector<8x128xf32>
    %204 = arith.addf %202, %203 : vector<8x128xf32>
    %205 = math.tanh %204 : vector<8x128xf32>
    %206 = arith.mulf %201, %205 : vector<8x128xf32>
    %207 = arith.truncf %206 : vector<8x128xf32> to vector<8x128xbf16>
    %c5 = arith.constant 5 : index
    %c0_88 = arith.constant 0 : index
    %c0_89 = arith.constant 0 : index
    %208 = vector.load %arg0[%c5, %c0_88, %c0_89] : memref<8x8x128xbf16, #tpu.memory_space<vmem>>, vector<1x8x128xbf16>
    %209 = vector.shape_cast %208 : vector<1x8x128xbf16> to vector<8x128xbf16>
    %c0_90 = arith.constant 0 : index
    %c0_91 = arith.constant 0 : index
    %210 = vector.load %arg1[%c0_90, %c0_91] : memref<128x512xbf16, #tpu.memory_space<vmem>>, vector<128x512xbf16>
    %cst_92 = arith.constant dense<0.000000e+00> : vector<8x512xf32>
    %211 = tpu.matmul %209, %210, %cst_92 {dimension_numbers = #tpu.dot_dimension_numbers<[1], [0], [0], [1], [0, 0, 1, 1], [], []>} : vector<8x128xbf16>, vector<128x512xbf16>, vector<8x512xf32> -> vector<8x512xf32>
    %212 = vector.broadcast %0 : vector<1x512xf32> to vector<8x512xf32>
    %213 = arith.addf %211, %212 : vector<8x512xf32>
    %c0_93 = arith.constant 0 : index
    %c0_94 = arith.constant 0 : index
    %214 = vector.load %arg2[%c0_93, %c0_94] : memref<128x512xbf16, #tpu.memory_space<vmem>>, vector<128x512xbf16>
    %cst_95 = arith.constant dense<0.000000e+00> : vector<8x512xf32>
    %215 = tpu.matmul %207, %214, %cst_95 {dimension_numbers = #tpu.dot_dimension_numbers<[1], [0], [0], [1], [0, 0, 1, 1], [], []>} : vector<8x128xbf16>, vector<128x512xbf16>, vector<8x512xf32> -> vector<8x512xf32>
    %216 = arith.addf %213, %215 : vector<8x512xf32>
    %217 = vector.extract_strided_slice %216 {offsets = [0, 0], sizes = [8, 128], strides = [1, 1]} : vector<8x512xf32> to vector<8x128xf32>
    %cst_96 = arith.constant 5.000000e-01 : f32
    %218 = vector.broadcast %cst_96 : f32 to vector<8x128xf32>
    %219 = arith.mulf %218, %217 : vector<8x128xf32>
    %220 = math.tanh %219 : vector<8x128xf32>
    %cst_97 = arith.constant 5.000000e-01 : f32
    %221 = vector.broadcast %cst_97 : f32 to vector<8x128xf32>
    %222 = arith.mulf %221, %220 : vector<8x128xf32>
    %cst_98 = arith.constant 5.000000e-01 : f32
    %223 = vector.broadcast %cst_98 : f32 to vector<8x128xf32>
    %224 = arith.addf %222, %223 : vector<8x128xf32>
    %225 = vector.extract_strided_slice %216 {offsets = [0, 128], sizes = [8, 128], strides = [1, 1]} : vector<8x512xf32> to vector<8x128xf32>
    %cst_99 = arith.constant 5.000000e-01 : f32
    %226 = vector.broadcast %cst_99 : f32 to vector<8x128xf32>
    %227 = arith.mulf %226, %225 : vector<8x128xf32>
    %228 = math.tanh %227 : vector<8x128xf32>
    %cst_100 = arith.constant 5.000000e-01 : f32
    %229 = vector.broadcast %cst_100 : f32 to vector<8x128xf32>
    %230 = arith.mulf %229, %228 : vector<8x128xf32>
    %cst_101 = arith.constant 5.000000e-01 : f32
    %231 = vector.broadcast %cst_101 : f32 to vector<8x128xf32>
    %232 = arith.addf %230, %231 : vector<8x128xf32>
    %233 = vector.extract_strided_slice %216 {offsets = [0, 256], sizes = [8, 128], strides = [1, 1]} : vector<8x512xf32> to vector<8x128xf32>
    %234 = math.tanh %233 : vector<8x128xf32>
    %235 = vector.extract_strided_slice %216 {offsets = [0, 384], sizes = [8, 128], strides = [1, 1]} : vector<8x512xf32> to vector<8x128xf32>
    %cst_102 = arith.constant 5.000000e-01 : f32
    %236 = vector.broadcast %cst_102 : f32 to vector<8x128xf32>
    %237 = arith.mulf %236, %235 : vector<8x128xf32>
    %238 = math.tanh %237 : vector<8x128xf32>
    %cst_103 = arith.constant 5.000000e-01 : f32
    %239 = vector.broadcast %cst_103 : f32 to vector<8x128xf32>
    %240 = arith.mulf %239, %238 : vector<8x128xf32>
    %cst_104 = arith.constant 5.000000e-01 : f32
    %241 = vector.broadcast %cst_104 : f32 to vector<8x128xf32>
    %242 = arith.addf %240, %241 : vector<8x128xf32>
    %243 = arith.mulf %232, %204 : vector<8x128xf32>
    %244 = arith.mulf %224, %234 : vector<8x128xf32>
    %245 = arith.addf %243, %244 : vector<8x128xf32>
    %246 = math.tanh %245 : vector<8x128xf32>
    %247 = arith.mulf %242, %246 : vector<8x128xf32>
    %248 = arith.truncf %247 : vector<8x128xf32> to vector<8x128xbf16>
    %c6 = arith.constant 6 : index
    %c0_105 = arith.constant 0 : index
    %c0_106 = arith.constant 0 : index
    %249 = vector.load %arg0[%c6, %c0_105, %c0_106] : memref<8x8x128xbf16, #tpu.memory_space<vmem>>, vector<1x8x128xbf16>
    %250 = vector.shape_cast %249 : vector<1x8x128xbf16> to vector<8x128xbf16>
    %c0_107 = arith.constant 0 : index
    %c0_108 = arith.constant 0 : index
    %251 = vector.load %arg1[%c0_107, %c0_108] : memref<128x512xbf16, #tpu.memory_space<vmem>>, vector<128x512xbf16>
    %cst_109 = arith.constant dense<0.000000e+00> : vector<8x512xf32>
    %252 = tpu.matmul %250, %251, %cst_109 {dimension_numbers = #tpu.dot_dimension_numbers<[1], [0], [0], [1], [0, 0, 1, 1], [], []>} : vector<8x128xbf16>, vector<128x512xbf16>, vector<8x512xf32> -> vector<8x512xf32>
    %253 = vector.broadcast %0 : vector<1x512xf32> to vector<8x512xf32>
    %254 = arith.addf %252, %253 : vector<8x512xf32>
    %c0_110 = arith.constant 0 : index
    %c0_111 = arith.constant 0 : index
    %255 = vector.load %arg2[%c0_110, %c0_111] : memref<128x512xbf16, #tpu.memory_space<vmem>>, vector<128x512xbf16>
    %cst_112 = arith.constant dense<0.000000e+00> : vector<8x512xf32>
    %256 = tpu.matmul %248, %255, %cst_112 {dimension_numbers = #tpu.dot_dimension_numbers<[1], [0], [0], [1], [0, 0, 1, 1], [], []>} : vector<8x128xbf16>, vector<128x512xbf16>, vector<8x512xf32> -> vector<8x512xf32>
    %257 = arith.addf %254, %256 : vector<8x512xf32>
    %258 = vector.extract_strided_slice %257 {offsets = [0, 0], sizes = [8, 128], strides = [1, 1]} : vector<8x512xf32> to vector<8x128xf32>
    %cst_113 = arith.constant 5.000000e-01 : f32
    %259 = vector.broadcast %cst_113 : f32 to vector<8x128xf32>
    %260 = arith.mulf %259, %258 : vector<8x128xf32>
    %261 = math.tanh %260 : vector<8x128xf32>
    %cst_114 = arith.constant 5.000000e-01 : f32
    %262 = vector.broadcast %cst_114 : f32 to vector<8x128xf32>
    %263 = arith.mulf %262, %261 : vector<8x128xf32>
    %cst_115 = arith.constant 5.000000e-01 : f32
    %264 = vector.broadcast %cst_115 : f32 to vector<8x128xf32>
    %265 = arith.addf %263, %264 : vector<8x128xf32>
    %266 = vector.extract_strided_slice %257 {offsets = [0, 128], sizes = [8, 128], strides = [1, 1]} : vector<8x512xf32> to vector<8x128xf32>
    %cst_116 = arith.constant 5.000000e-01 : f32
    %267 = vector.broadcast %cst_116 : f32 to vector<8x128xf32>
    %268 = arith.mulf %267, %266 : vector<8x128xf32>
    %269 = math.tanh %268 : vector<8x128xf32>
    %cst_117 = arith.constant 5.000000e-01 : f32
    %270 = vector.broadcast %cst_117 : f32 to vector<8x128xf32>
    %271 = arith.mulf %270, %269 : vector<8x128xf32>
    %cst_118 = arith.constant 5.000000e-01 : f32
    %272 = vector.broadcast %cst_118 : f32 to vector<8x128xf32>
    %273 = arith.addf %271, %272 : vector<8x128xf32>
    %274 = vector.extract_strided_slice %257 {offsets = [0, 256], sizes = [8, 128], strides = [1, 1]} : vector<8x512xf32> to vector<8x128xf32>
    %275 = math.tanh %274 : vector<8x128xf32>
    %276 = vector.extract_strided_slice %257 {offsets = [0, 384], sizes = [8, 128], strides = [1, 1]} : vector<8x512xf32> to vector<8x128xf32>
    %cst_119 = arith.constant 5.000000e-01 : f32
    %277 = vector.broadcast %cst_119 : f32 to vector<8x128xf32>
    %278 = arith.mulf %277, %276 : vector<8x128xf32>
    %279 = math.tanh %278 : vector<8x128xf32>
    %cst_120 = arith.constant 5.000000e-01 : f32
    %280 = vector.broadcast %cst_120 : f32 to vector<8x128xf32>
    %281 = arith.mulf %280, %279 : vector<8x128xf32>
    %cst_121 = arith.constant 5.000000e-01 : f32
    %282 = vector.broadcast %cst_121 : f32 to vector<8x128xf32>
    %283 = arith.addf %281, %282 : vector<8x128xf32>
    %284 = arith.mulf %273, %245 : vector<8x128xf32>
    %285 = arith.mulf %265, %275 : vector<8x128xf32>
    %286 = arith.addf %284, %285 : vector<8x128xf32>
    %287 = math.tanh %286 : vector<8x128xf32>
    %288 = arith.mulf %283, %287 : vector<8x128xf32>
    %289 = arith.truncf %288 : vector<8x128xf32> to vector<8x128xbf16>
    %c7 = arith.constant 7 : index
    %c0_122 = arith.constant 0 : index
    %c0_123 = arith.constant 0 : index
    %290 = vector.load %arg0[%c7, %c0_122, %c0_123] : memref<8x8x128xbf16, #tpu.memory_space<vmem>>, vector<1x8x128xbf16>
    %291 = vector.shape_cast %290 : vector<1x8x128xbf16> to vector<8x128xbf16>
    %c0_124 = arith.constant 0 : index
    %c0_125 = arith.constant 0 : index
    %292 = vector.load %arg1[%c0_124, %c0_125] : memref<128x512xbf16, #tpu.memory_space<vmem>>, vector<128x512xbf16>
    %cst_126 = arith.constant dense<0.000000e+00> : vector<8x512xf32>
    %293 = tpu.matmul %291, %292, %cst_126 {dimension_numbers = #tpu.dot_dimension_numbers<[1], [0], [0], [1], [0, 0, 1, 1], [], []>} : vector<8x128xbf16>, vector<128x512xbf16>, vector<8x512xf32> -> vector<8x512xf32>
    %294 = vector.broadcast %0 : vector<1x512xf32> to vector<8x512xf32>
    %295 = arith.addf %293, %294 : vector<8x512xf32>
    %c0_127 = arith.constant 0 : index
    %c0_128 = arith.constant 0 : index
    %296 = vector.load %arg2[%c0_127, %c0_128] : memref<128x512xbf16, #tpu.memory_space<vmem>>, vector<128x512xbf16>
    %cst_129 = arith.constant dense<0.000000e+00> : vector<8x512xf32>
    %297 = tpu.matmul %289, %296, %cst_129 {dimension_numbers = #tpu.dot_dimension_numbers<[1], [0], [0], [1], [0, 0, 1, 1], [], []>} : vector<8x128xbf16>, vector<128x512xbf16>, vector<8x512xf32> -> vector<8x512xf32>
    %298 = arith.addf %295, %297 : vector<8x512xf32>
    %299 = vector.extract_strided_slice %298 {offsets = [0, 0], sizes = [8, 128], strides = [1, 1]} : vector<8x512xf32> to vector<8x128xf32>
    %cst_130 = arith.constant 5.000000e-01 : f32
    %300 = vector.broadcast %cst_130 : f32 to vector<8x128xf32>
    %301 = arith.mulf %300, %299 : vector<8x128xf32>
    %302 = math.tanh %301 : vector<8x128xf32>
    %cst_131 = arith.constant 5.000000e-01 : f32
    %303 = vector.broadcast %cst_131 : f32 to vector<8x128xf32>
    %304 = arith.mulf %303, %302 : vector<8x128xf32>
    %cst_132 = arith.constant 5.000000e-01 : f32
    %305 = vector.broadcast %cst_132 : f32 to vector<8x128xf32>
    %306 = arith.addf %304, %305 : vector<8x128xf32>
    %307 = vector.extract_strided_slice %298 {offsets = [0, 128], sizes = [8, 128], strides = [1, 1]} : vector<8x512xf32> to vector<8x128xf32>
    %cst_133 = arith.constant 5.000000e-01 : f32
    %308 = vector.broadcast %cst_133 : f32 to vector<8x128xf32>
    %309 = arith.mulf %308, %307 : vector<8x128xf32>
    %310 = math.tanh %309 : vector<8x128xf32>
    %cst_134 = arith.constant 5.000000e-01 : f32
    %311 = vector.broadcast %cst_134 : f32 to vector<8x128xf32>
    %312 = arith.mulf %311, %310 : vector<8x128xf32>
    %cst_135 = arith.constant 5.000000e-01 : f32
    %313 = vector.broadcast %cst_135 : f32 to vector<8x128xf32>
    %314 = arith.addf %312, %313 : vector<8x128xf32>
    %315 = vector.extract_strided_slice %298 {offsets = [0, 256], sizes = [8, 128], strides = [1, 1]} : vector<8x512xf32> to vector<8x128xf32>
    %316 = math.tanh %315 : vector<8x128xf32>
    %317 = vector.extract_strided_slice %298 {offsets = [0, 384], sizes = [8, 128], strides = [1, 1]} : vector<8x512xf32> to vector<8x128xf32>
    %cst_136 = arith.constant 5.000000e-01 : f32
    %318 = vector.broadcast %cst_136 : f32 to vector<8x128xf32>
    %319 = arith.mulf %318, %317 : vector<8x128xf32>
    %320 = math.tanh %319 : vector<8x128xf32>
    %cst_137 = arith.constant 5.000000e-01 : f32
    %321 = vector.broadcast %cst_137 : f32 to vector<8x128xf32>
    %322 = arith.mulf %321, %320 : vector<8x128xf32>
    %cst_138 = arith.constant 5.000000e-01 : f32
    %323 = vector.broadcast %cst_138 : f32 to vector<8x128xf32>
    %324 = arith.addf %322, %323 : vector<8x128xf32>
    %325 = arith.mulf %314, %286 : vector<8x128xf32>
    %326 = arith.mulf %306, %316 : vector<8x128xf32>
    %327 = arith.addf %325, %326 : vector<8x128xf32>
    %328 = math.tanh %327 : vector<8x128xf32>
    %329 = arith.mulf %324, %328 : vector<8x128xf32>
    %330 = arith.truncf %329 : vector<8x128xf32> to vector<8x128xbf16>
    %c0_139 = arith.constant 0 : index
    %c0_140 = arith.constant 0 : index
    %331 = vector.load %arg4[%c0_139, %c0_140] : memref<128x128xbf16, #tpu.memory_space<vmem>>, vector<128x128xbf16>
    %cst_141 = arith.constant dense<0.000000e+00> : vector<8x128xf32>
    %332 = tpu.matmul %330, %331, %cst_141 {dimension_numbers = #tpu.dot_dimension_numbers<[1], [0], [0], [1], [0, 0, 1, 1], [], []>} : vector<8x128xbf16>, vector<128x128xbf16>, vector<8x128xf32> -> vector<8x128xf32>
    %c0_142 = arith.constant 0 : index
    %c0_143 = arith.constant 0 : index
    %333 = vector.load %arg5[%c0_142, %c0_143] : memref<1x128xf32, #tpu.memory_space<vmem>>, vector<1x128xf32>
    %334 = vector.broadcast %333 : vector<1x128xf32> to vector<8x128xf32>
    %335 = arith.addf %332, %334 : vector<8x128xf32>
    %cst_144 = arith.constant 5.000000e-01 : f32
    %336 = vector.broadcast %cst_144 : f32 to vector<8x128xf32>
    %337 = arith.mulf %336, %335 : vector<8x128xf32>
    %338 = math.tanh %337 : vector<8x128xf32>
    %cst_145 = arith.constant 5.000000e-01 : f32
    %339 = vector.broadcast %cst_145 : f32 to vector<8x128xf32>
    %340 = arith.mulf %339, %338 : vector<8x128xf32>
    %cst_146 = arith.constant 5.000000e-01 : f32
    %341 = vector.broadcast %cst_146 : f32 to vector<8x128xf32>
    %342 = arith.addf %340, %341 : vector<8x128xf32>
    %343 = arith.mulf %335, %342 : vector<8x128xf32>
    %344 = arith.truncf %343 : vector<8x128xf32> to vector<8x128xbf16>
    %c0_147 = arith.constant 0 : index
    %c0_148 = arith.constant 0 : index
    %345 = vector.load %arg6[%c0_147, %c0_148] : memref<128x128xbf16, #tpu.memory_space<vmem>>, vector<128x128xbf16>
    %cst_149 = arith.constant dense<0.000000e+00> : vector<8x128xf32>
    %346 = tpu.matmul %344, %345, %cst_149 {dimension_numbers = #tpu.dot_dimension_numbers<[1], [0], [0], [1], [0, 0, 1, 1], [], []>} : vector<8x128xbf16>, vector<128x128xbf16>, vector<8x128xf32> -> vector<8x128xf32>
    %c0_150 = arith.constant 0 : index
    %c0_151 = arith.constant 0 : index
    %347 = vector.load %arg7[%c0_150, %c0_151] : memref<1x128xf32, #tpu.memory_space<vmem>>, vector<1x128xf32>
    %348 = vector.broadcast %347 : vector<1x128xf32> to vector<8x128xf32>
    %349 = arith.addf %346, %348 : vector<8x128xf32>
    %c0_152 = arith.constant 0 : index
    %c0_153 = arith.constant 0 : index
    %350 = vector.load %arg8[%c0_152, %c0_153] : memref<8x128xf32, #tpu.memory_space<vmem>>, vector<8x128xf32>
    tpu.vector_store %arg8[%c0_152, %c0_153], %349 {strides = array<i32>} : memref<8x128xf32, #tpu.memory_space<vmem>>, vector<8x128xf32>,
    return
  }
}

</mosaic_0001>

<llo_original>
// kernel: lstm_model_forward.1
$region0: #{lstm_model_forward.1}
  #allocation0 [shape = 'u32[]', space=smem, size = 0x4, offset = 0x4, fixed_abs, tag = 'smem constant byte address 0x4 - core index']
  #allocation1 [shape = 'u32[144,128]{1,0:T(1,128)}', space=vmem, size = 0x12000, scoped, tag = 'internal scratch']
  %s0 = inlined_call_operand.vmem [shape: bf16[8,8,128], index: 0, kind: input, shape index: {}]
  %s1 = inlined_call_operand.hbm [shape: bf16[128,512], index: 1, kind: input, shape index: {}]
  %s2 = inlined_call_operand.hbm [shape: bf16[128,512], index: 2, kind: input, shape index: {}]
  %s3 = inlined_call_operand.vmem [shape: f32[1,512], index: 3, kind: input, shape index: {}]
  %s4 = inlined_call_operand.vmem [shape: bf16[128,128], index: 4, kind: input, shape index: {}]
  %s5 = inlined_call_operand.vmem [shape: f32[1,128], index: 5, kind: input, shape index: {}]
  %s6 = inlined_call_operand.hbm [shape: bf16[128,128], index: 6, kind: input, shape index: {}]
  %s7 = inlined_call_operand.vmem [shape: f32[1,128], index: 7, kind: input, shape index: {}]
  %s8 = inlined_call_operand.hbm [shape: f32[8,128], index: 8, kind: output, shape index: {}]
  %s9 = sld [smem:[#allocation0]]
  $region54: #{lstm_model_forward.1} parent=0
    _
  %s11 = ssub.s32 1, %s9
  %s12 = scalar_select 0, %s11, %s9
  $region1: #{lstm_model_forward.1} parent=0
    #allocation2 [shape = 'u8[131072]{0}', space=vmem, size = 0x20000, scoped, tag = 'input window, operand 1, single buffered']
    #allocation3 [shape = 's32[1]{0}', space=sflag, size = 0x4, scoped, tag = 'scoped memory for lstm_model_forward.1']
    #allocation4 [shape = 's32[1]{0}', space=sflag, size = 0x4, scoped, tag = 'scoped memory for lstm_model_forward.1']
    #allocation5 [shape = 'u8[131072]{0}', space=vmem, size = 0x20000, scoped, tag = 'input window, operand 2, single buffered']
    #allocation6 [shape = 's32[1]{0}', space=sflag, size = 0x4, scoped, tag = 'scoped memory for lstm_model_forward.1']
    #allocation7 [shape = 'u8[32768]{0}', space=vmem, size = 0x8000, scoped, tag = 'input window, operand 6, single buffered']
    #allocation8 [shape = 'u8[4096]{0}', space=vmem, size = 0x1000, scoped, tag = 'output window, operand 0, single buffered']
    %13 = vsyncpa [#allocation3], 0
    %14 = vsyncpa [#allocation6], 0
    %15 = vsyncpa [#allocation4], 0
    // Predicated region
    $region2: #{lstm_model_forward.1} parent=1 // pred_check
      _
    $region3: #{lstm_model_forward.1} parent=1 // pred_check_branch
      %17 = sbr.rel (0) target = $region5
    $region4: #{lstm_model_forward.1} parent=1 // pred_region
      _
    $region5: #{lstm_model_forward.1} parent=1 // pred_fallthru
      _
    // Predicated region
    $region6: #{lstm_model_forward.1} parent=1 // pred_check
      _
    $region7: #{lstm_model_forward.1} parent=1 // pred_check_branch
      %19 = sbr.rel (0) target = $region9
    $region8: #{lstm_model_forward.1} parent=1 // pred_region
      %s21 = ssub.s32 4096, 4096
      %22 = vsyncadd [#allocation3], %s21
      %s23 = sshll.u32 [#allocation2], 4
      %s24 = int_to_ptr.vmem [resolvable:$true] %s23
      %29 = dma.hbm_to_vmem [thread:$0]  %s1, 4096, %s24, [#allocation3], 256, 256, 16
    $region9: #{lstm_model_forward.1} parent=1 // pred_fallthru
      _
    // Predicated region
    $region10: #{lstm_model_forward.1} parent=1 // pred_check
      _
    $region11: #{lstm_model_forward.1} parent=1 // pred_check_branch
      %31 = sbr.rel (0) target = $region13
    $region12: #{lstm_model_forward.1} parent=1 // pred_region
      %s33 = ssub.s32 4096, 4096
      %34 = vsyncadd [#allocation6], %s33
      %s35 = sshll.u32 [#allocation5], 4
      %s36 = int_to_ptr.vmem [resolvable:$true] %s35
      %41 = dma.hbm_to_vmem [thread:$0]  %s2, 4096, %s36, [#allocation6], 256, 256, 16
    $region13: #{lstm_model_forward.1} parent=1 // pred_fallthru
      _
    // Predicated region
    $region14: #{lstm_model_forward.1} parent=1 // pred_check
      _
    $region15: #{lstm_model_forward.1} parent=1 // pred_check_branch
      %43 = sbr.rel (0) target = $region17
    $region16: #{lstm_model_forward.1} parent=1 // pred_region
      _
    $region17: #{lstm_model_forward.1} parent=1 // pred_fallthru
      _
    // Predicated region
    $region18: #{lstm_model_forward.1} parent=1 // pred_check
      _
    $region19: #{lstm_model_forward.1} parent=1 // pred_check_branch
      %45 = sbr.rel (0) target = $region21
    $region20: #{lstm_model_forward.1} parent=1 // pred_region
      _
    $region21: #{lstm_model_forward.1} parent=1 // pred_fallthru
      _
    // Predicated region
    $region22: #{lstm_model_forward.1} parent=1 // pred_check
      _
    $region23: #{lstm_model_forward.1} parent=1 // pred_check_branch
      %47 = sbr.rel (0) target = $region25
    $region24: #{lstm_model_forward.1} parent=1 // pred_region
      _
    $region25: #{lstm_model_forward.1} parent=1 // pred_fallthru
      _
    // Predicated region
    $region26: #{lstm_model_forward.1} parent=1 // pred_check
      _
    $region27: #{lstm_model_forward.1} parent=1 // pred_check_branch
      %49 = sbr.rel (0) target = $region29
    $region28: #{lstm_model_forward.1} parent=1 // pred_region
      %s51 = ssub.s32 1024, 1024
      %52 = vsyncadd [#allocation6], %s51
      %s53 = sshll.u32 [#allocation7], 4
      %s54 = int_to_ptr.vmem [resolvable:$true] %s53
      %59 = dma.hbm_to_vmem [thread:$0]  %s6, 1024, %s54, [#allocation6], 64, 64, 4
    $region29: #{lstm_model_forward.1} parent=1 // pred_fallthru
      _
    // Predicated region
    $region30: #{lstm_model_forward.1} parent=1 // pred_check
      _
    $region31: #{lstm_model_forward.1} parent=1 // pred_check_branch
      %61 = sbr.rel (0) target = $region33
    $region32: #{lstm_model_forward.1} parent=1 // pred_region
      _
    $region33: #{lstm_model_forward.1} parent=1 // pred_fallthru
      _
    // Predicated region
    $region34: #{lstm_model_forward.1} parent=1 // pred_check
      _
    $region35: #{lstm_model_forward.1} parent=1 // pred_check_branch
      %63 = sbr.rel (0) target = $region37
    $region36: #{lstm_model_forward.1} parent=1 // pred_region
      %64 = dma.done [#allocation3], 4096
    $region37: #{lstm_model_forward.1} parent=1 // pred_fallthru
      _
    // Predicated region
    $region38: #{lstm_model_forward.1} parent=1 // pred_check
      _
    $region39: #{lstm_model_forward.1} parent=1 // pred_check_branch
      %66 = sbr.rel (0) target = $region41
    $region40: #{lstm_model_forward.1} parent=1 // pred_region
      %67 = dma.done [#allocation6], 4096
    $region41: #{lstm_model_forward.1} parent=1 // pred_fallthru
      _
    // Predicated region
    $region42: #{lstm_model_forward.1} parent=1 // pred_check
      _
    $region43: #{lstm_model_forward.1} parent=1 // pred_check_branch
      %69 = sbr.rel (0) target = $region45
    $region44: #{lstm_model_forward.1} parent=1 // pred_region
      %70 = dma.done [#allocation6], 1024
    $region45: #{lstm_model_forward.1} parent=1 // pred_fallthru
      _
    %v72 = vld [vmem:[%s3] sm:$0xf]
    %v73 = vld [vmem:[%s0] sm:$0xf]
    %v74 = vld [vmem:[#allocation2] sm:$0xff]
    %v75 = vld [vmem:[#allocation2 + $0x8] sm:$0xff]
    %v76 = vld [vmem:[#allocation2 + $0x10] sm:$0xff]
    %v77 = vld [vmem:[#allocation2 + $0x18] sm:$0xff]
    %v78 = vld [vmem:[#allocation2 + $0x20] sm:$0xff]
    %v79 = vld [vmem:[#allocation2 + $0x28] sm:$0xff]
    %v80 = vld [vmem:[#allocation2 + $0x30] sm:$0xff]
    %v81 = vld [vmem:[#allocation2 + $0x38] sm:$0xff]
    %v82 = vld [vmem:[#allocation2 + $0x40] sm:$0xff]
    %v83 = vld [vmem:[#allocation2 + $0x48] sm:$0xff]
    %v84 = vld [vmem:[#allocation2 + $0x50] sm:$0xff]
    %v85 = vld [vmem:[#allocation2 + $0x58] sm:$0xff]
    %v86 = vld [vmem:[#allocation2 + $0x60] sm:$0xff]
    %v87 = vld [vmem:[#allocation2 + $0x68] sm:$0xff]
    %v88 = vld [vmem:[#allocation2 + $0x70] sm:$0xff]
    %v89 = vld [vmem:[#allocation2 + $0x78] sm:$0xff]
    %v90 = vld [vmem:[#allocation2 + $0x80] sm:$0xff]
    %v91 = vld [vmem:[#allocation2 + $0x88] sm:$0xff]
    %v92 = vld [vmem:[#allocation2 + $0x90] sm:$0xff]
    %v93 = vld [vmem:[#allocation2 + $0x98] sm:$0xff]
    %v94 = vld [vmem:[#allocation2 + $0xa0] sm:$0xff]
    %v95 = vld [vmem:[#allocation2 + $0xa8] sm:$0xff]
    %v96 = vld [vmem:[#allocation2 + $0xb0] sm:$0xff]
    %v97 = vld [vmem:[#allocation2 + $0xb8] sm:$0xff]
    %v98 = vld [vmem:[#allocation2 + $0xc0] sm:$0xff]
    %v99 = vld [vmem:[#allocation2 + $0xc8] sm:$0xff]
    %v100 = vld [vmem:[#allocation2 + $0xd0] sm:$0xff]
    %v101 = vld [vmem:[#allocation2 + $0xd8] sm:$0xff]
    %v102 = vld [vmem:[#allocation2 + $0xe0] sm:$0xff]
    %v103 = vld [vmem:[#allocation2 + $0xe8] sm:$0xff]
    %v104 = vld [vmem:[#allocation2 + $0xf0] sm:$0xff]
    %v105 = vld [vmem:[#allocation2 + $0xf8] sm:$0xff]
    %v107 = vlaneseq
    %v108 = vshrl.u32 %v107, 7
    %v109 = vsub.s32 0, %v108
    %v110 = vrot.slane %v72, %v109
    %v111 = vlaneseq
    %v112 = vshrl.u32 %v111, 7
    %v113 = vsub.s32 1, %v112
    %v114 = vrot.slane %v72, %v113
    %v115 = vlaneseq
    %v116 = vshrl.u32 %v115, 7
    %v117 = vsub.s32 2, %v116
    %v118 = vrot.slane %v72, %v117
    %v119 = vlaneseq
    %v120 = vshrl.u32 %v119, 7
    %v121 = vsub.s32 3, %v120
    %v122 = vrot.slane %v72, %v121
    %v159 = vunpack.c.l.b16 %v74
    %v160 = vunpack.c.h.b16 %v74
    %v161 = vunpack.c.l.b16 %v75
    %v162 = vunpack.c.h.b16 %v75
    %v163 = vunpack.c.l.b16 %v76
    %v164 = vunpack.c.h.b16 %v76
    %v165 = vunpack.c.l.b16 %v77
    %v166 = vunpack.c.h.b16 %v77
    %v167 = vunpack.c.l.b16 %v78
    %v168 = vunpack.c.h.b16 %v78
    %v169 = vunpack.c.l.b16 %v79
    %v170 = vunpack.c.h.b16 %v79
    %v171 = vunpack.c.l.b16 %v80
    %v172 = vunpack.c.h.b16 %v80
    %v173 = vunpack.c.l.b16 %v81
    %v174 = vunpack.c.h.b16 %v81
    %v175 = vunpack.c.l.b16 %v82
    %v176 = vunpack.c.h.b16 %v82
    %v177 = vunpack.c.l.b16 %v83
    %v178 = vunpack.c.h.b16 %v83
    %v179 = vunpack.c.l.b16 %v84
    %v180 = vunpack.c.h.b16 %v84
    %v181 = vunpack.c.l.b16 %v85
    %v182 = vunpack.c.h.b16 %v85
    %v183 = vunpack.c.l.b16 %v86
    %v184 = vunpack.c.h.b16 %v86
    %v185 = vunpack.c.l.b16 %v87
    %v186 = vunpack.c.h.b16 %v87
    %v187 = vunpack.c.l.b16 %v88
    %v188 = vunpack.c.h.b16 %v88
    %v189 = vunpack.c.l.b16 %v89
    %v190 = vunpack.c.h.b16 %v89
    %v191 = vunpack.c.l.b16 %v90
    %v192 = vunpack.c.h.b16 %v90
    %v193 = vunpack.c.l.b16 %v91
    %v194 = vunpack.c.h.b16 %v91
    %v195 = vunpack.c.l.b16 %v92
    %v196 = vunpack.c.h.b16 %v92
    %v197 = vunpack.c.l.b16 %v93
    %v198 = vunpack.c.h.b16 %v93
    %v199 = vunpack.c.l.b16 %v94
    %v200 = vunpack.c.h.b16 %v94
    %v201 = vunpack.c.l.b16 %v95
    %v202 = vunpack.c.h.b16 %v95
    %v203 = vunpack.c.l.b16 %v96
    %v204 = vunpack.c.h.b16 %v96
    %v205 = vunpack.c.l.b16 %v97
    %v206 = vunpack.c.h.b16 %v97
    %v207 = vunpack.c.l.b16 %v98
    %v208 = vunpack.c.h.b16 %v98
    %v209 = vunpack.c.l.b16 %v99
    %v210 = vunpack.c.h.b16 %v99
    %v211 = vunpack.c.l.b16 %v100
    %v212 = vunpack.c.h.b16 %v100
    %v213 = vunpack.c.l.b16 %v101
    %v214 = vunpack.c.h.b16 %v101
    %v215 = vunpack.c.l.b16 %v102
    %v216 = vunpack.c.h.b16 %v102
    %v217 = vunpack.c.l.b16 %v103
    %v218 = vunpack.c.h.b16 %v103
    %v219 = vunpack.c.l.b16 %v104
    %v220 = vunpack.c.h.b16 %v104
    %v221 = vunpack.c.l.b16 %v105
    %v222 = vunpack.c.h.b16 %v105
    %v223 = vpack.c.b16 %v163, %v159
    %v224 = vpack.c.b16 %v164, %v160
    %v225 = vpack.c.b16 %v165, %v161
    %v226 = vpack.c.b16 %v166, %v162
    %v227 = vpack.c.b16 %v171, %v167
    %v228 = vpack.c.b16 %v172, %v168
    %v229 = vpack.c.b16 %v173, %v169
    %v230 = vpack.c.b16 %v174, %v170
    %v231 = vpack.c.b16 %v179, %v175
    %v232 = vpack.c.b16 %v180, %v176
    %v233 = vpack.c.b16 %v181, %v177
    %v234 = vpack.c.b16 %v182, %v178
    %v235 = vpack.c.b16 %v187, %v183
    %v236 = vpack.c.b16 %v188, %v184
    %v237 = vpack.c.b16 %v189, %v185
    %v238 = vpack.c.b16 %v190, %v186
    %v239 = vpack.c.b16 %v195, %v191
    %v240 = vpack.c.b16 %v196, %v192
    %v241 = vpack.c.b16 %v197, %v193
    %v242 = vpack.c.b16 %v198, %v194
    %v243 = vpack.c.b16 %v203, %v199
    %v244 = vpack.c.b16 %v204, %v200
    %v245 = vpack.c.b16 %v205, %v201
    %v246 = vpack.c.b16 %v206, %v202
    %v247 = vpack.c.b16 %v211, %v207
    %v248 = vpack.c.b16 %v212, %v208
    %v249 = vpack.c.b16 %v213, %v209
    %v250 = vpack.c.b16 %v214, %v210
    %v251 = vpack.c.b16 %v219, %v215
    %v252 = vpack.c.b16 %v220, %v216
    %v253 = vpack.c.b16 %v221, %v217
    %v254 = vpack.c.b16 %v222, %v218
    %287 = vmatprep.subr.bf16.mxu0 %v224
    %288 = vmatpush1.bf16.msra.mxu0 %v223
    %289 = vmatprep.subr.bf16.mxu0 %v228
    %290 = vmatpush1.bf16.msra.mxu0 %v227
    %291 = vmatprep.subr.bf16.mxu0 %v232
    %292 = vmatpush1.bf16.msra.mxu0 %v231
    %293 = vmatprep.subr.bf16.mxu0 %v236
    %294 = vmatpush1.bf16.msra.mxu0 %v235
    %295 = vmatprep.subr.bf16.mxu0 %v240
    %296 = vmatpush1.bf16.msra.mxu0 %v239
    %297 = vmatprep.subr.bf16.mxu0 %v244
    %298 = vmatpush1.bf16.msra.mxu0 %v243
    %299 = vmatprep.subr.bf16.mxu0 %v248
    %300 = vmatpush1.bf16.msra.mxu0 %v247
    %301 = vmatprep.subr.bf16.mxu0 %v252
    %302 = vmatpush1.bf16.msra.mxu0 %v251
    %303 = vmatprep.subr.bf16.mxu0 0
    %304 = vmatpush1.bf16.msra.mxu0 0
    %305 = vmatprep.subr.bf16.mxu0 0
    %306 = vmatpush1.bf16.msra.mxu0 0
    %307 = vmatprep.subr.bf16.mxu0 0
    %308 = vmatpush1.bf16.msra.mxu0 0
    %309 = vmatprep.subr.bf16.mxu0 0
    %310 = vmatpush1.bf16.msra.mxu0 0
    %311 = vmatprep.subr.bf16.mxu0 0
    %312 = vmatpush1.bf16.msra.mxu0 0
    %313 = vmatprep.subr.bf16.mxu0 0
    %314 = vmatpush1.bf16.msra.mxu0 0
    %315 = vmatprep.subr.bf16.mxu0 0
    %316 = vmatpush1.bf16.msra.mxu0 0
    %317 = vmatprep.subr.bf16.mxu0 0
    %318 = vmatpush1.bf16.msra.mxu0 0
    %319 = vmatprep.mubr.bf16.mxu0 0
    %320 = vmatmul.mubr.bf16.gmra.mrb[0].mxu0 %v73
    %v321 = vpop.f32.mrb[0].mxu0
    %v322 = vadd.f32 %v110, %v321
    %v323 = vpop.f32.mrb[0].mxu0
    %v324 = vadd.f32 %v114, %v323
    %v325 = vpop.f32.mrb[0].mxu0
    %v326 = vpop.f32.mrb[0].mxu0
    %327 = vdwg.mxu0
    %328 = vmatprep.subr.bf16.mxu0 %v226
    %329 = vmatpush1.bf16.msra.mxu0 %v225
    %330 = vmatprep.subr.bf16.mxu0 %v230
    %331 = vmatpush1.bf16.msra.mxu0 %v229
    %332 = vmatprep.subr.bf16.mxu0 %v234
    %333 = vmatpush1.bf16.msra.mxu0 %v233
    %334 = vmatprep.subr.bf16.mxu0 %v238
    %335 = vmatpush1.bf16.msra.mxu0 %v237
    %336 = vmatprep.subr.bf16.mxu0 %v242
    %337 = vmatpush1.bf16.msra.mxu0 %v241
    %338 = vmatprep.subr.bf16.mxu0 %v246
    %339 = vmatpush1.bf16.msra.mxu0 %v245
    %340 = vmatprep.subr.bf16.mxu0 %v250
    %341 = vmatpush1.bf16.msra.mxu0 %v249
    %342 = vmatprep.subr.bf16.mxu0 %v254
    %343 = vmatpush1.bf16.msra.mxu0 %v253
    %344 = vmatprep.subr.bf16.mxu0 0
    %345 = vmatpush1.bf16.msra.mxu0 0
    %346 = vmatprep.subr.bf16.mxu0 0
    %347 = vmatpush1.bf16.msra.mxu0 0
    %348 = vmatprep.subr.bf16.mxu0 0
    %349 = vmatpush1.bf16.msra.mxu0 0
    %350 = vmatprep.subr.bf16.mxu0 0
    %351 = vmatpush1.bf16.msra.mxu0 0
    %352 = vmatprep.subr.bf16.mxu0 0
    %353 = vmatpush1.bf16.msra.mxu0 0
    %354 = vmatprep.subr.bf16.mxu0 0
    %355 = vmatpush1.bf16.msra.mxu0 0
    %356 = vmatprep.subr.bf16.mxu0 0
    %357 = vmatpush1.bf16.msra.mxu0 0
    %358 = vmatprep.subr.bf16.mxu0 0
    %359 = vmatpush1.bf16.msra.mxu0 0
    %360 = vmatprep.mubr.bf16.mxu0 0
    %361 = vmatmul.mubr.bf16.gmra.mrb[0].mxu0 %v73
    %v362 = vpop.f32.mrb[0].mxu0
    %v363 = vadd.f32 %v118, %v362
    %v364 = vpop.f32.mrb[0].mxu0
    %v365 = vadd.f32 %v122, %v364
    %v366 = vpop.f32.mrb[0].mxu0
    %v367 = vpop.f32.mrb[0].mxu0
    %368 = vdwg.mxu0
    %v369 = vld [vmem:[#allocation5] sm:$0xff]
    %v370 = vld [vmem:[#allocation5 + $0x8] sm:$0xff]
    %v371 = vld [vmem:[#allocation5 + $0x10] sm:$0xff]
    %v372 = vld [vmem:[#allocation5 + $0x18] sm:$0xff]
    %v373 = vld [vmem:[#allocation5 + $0x20] sm:$0xff]
    %v374 = vld [vmem:[#allocation5 + $0x28] sm:$0xff]
    %v375 = vld [vmem:[#allocation5 + $0x30] sm:$0xff]
    %v376 = vld [vmem:[#allocation5 + $0x38] sm:$0xff]
    %v377 = vld [vmem:[#allocation5 + $0x40] sm:$0xff]
    %v378 = vld [vmem:[#allocation5 + $0x48] sm:$0xff]
    %v379 = vld [vmem:[#allocation5 + $0x50] sm:$0xff]
    %v380 = vld [vmem:[#allocation5 + $0x58] sm:$0xff]
    %v381 = vld [vmem:[#allocation5 + $0x60] sm:$0xff]
    %v382 = vld [vmem:[#allocation5 + $0x68] sm:$0xff]
    %v383 = vld [vmem:[#allocation5 + $0x70] sm:$0xff]
    %v384 = vld [vmem:[#allocation5 + $0x78] sm:$0xff]
    %v385 = vld [vmem:[#allocation5 + $0x80] sm:$0xff]
    %v386 = vld [vmem:[#allocation5 + $0x88] sm:$0xff]
    %v387 = vld [vmem:[#allocation5 + $0x90] sm:$0xff]
    %v388 = vld [vmem:[#allocation5 + $0x98] sm:$0xff]
    %v389 = vld [vmem:[#allocation5 + $0xa0] sm:$0xff]
    %v390 = vld [vmem:[#allocation5 + $0xa8] sm:$0xff]
    %v391 = vld [vmem:[#allocation5 + $0xb0] sm:$0xff]
    %v392 = vld [vmem:[#allocation5 + $0xb8] sm:$0xff]
    %v393 = vld [vmem:[#allocation5 + $0xc0] sm:$0xff]
    %v394 = vld [vmem:[#allocation5 + $0xc8] sm:$0xff]
    %v395 = vld [vmem:[#allocation5 + $0xd0] sm:$0xff]
    %v396 = vld [vmem:[#allocation5 + $0xd8] sm:$0xff]
    %v397 = vld [vmem:[#allocation5 + $0xe0] sm:$0xff]
    %v398 = vld [vmem:[#allocation5 + $0xe8] sm:$0xff]
    %v399 = vld [vmem:[#allocation5 + $0xf0] sm:$0xff]
    %v400 = vld [vmem:[#allocation5 + $0xf8] sm:$0xff]
    %v433 = vunpack.c.l.b16 %v369
    %v434 = vunpack.c.h.b16 %v369
    %v435 = vunpack.c.l.b16 %v370
    %v436 = vunpack.c.h.b16 %v370
    %v437 = vunpack.c.l.b16 %v371
    %v438 = vunpack.c.h.b16 %v371
    %v439 = vunpack.c.l.b16 %v372
    %v440 = vunpack.c.h.b16 %v372
    %v441 = vunpack.c.l.b16 %v373
    %v442 = vunpack.c.h.b16 %v373
    %v443 = vunpack.c.l.b16 %v374
    %v444 = vunpack.c.h.b16 %v374
    %v445 = vunpack.c.l.b16 %v375
    %v446 = vunpack.c.h.b16 %v375
    %v447 = vunpack.c.l.b16 %v376
    %v448 = vunpack.c.h.b16 %v376
    %v449 = vunpack.c.l.b16 %v377
    %v450 = vunpack.c.h.b16 %v377
    %v451 = vunpack.c.l.b16 %v378
    %v452 = vunpack.c.h.b16 %v378
    %v453 = vunpack.c.l.b16 %v379
    %v454 = vunpack.c.h.b16 %v379
    %v455 = vunpack.c.l.b16 %v380
    %v456 = vunpack.c.h.b16 %v380
    %v457 = vunpack.c.l.b16 %v381
    %v458 = vunpack.c.h.b16 %v381
    %v459 = vunpack.c.l.b16 %v382
    %v460 = vunpack.c.h.b16 %v382
    %v461 = vunpack.c.l.b16 %v383
    %v462 = vunpack.c.h.b16 %v383
    %v463 = vunpack.c.l.b16 %v384
    %v464 = vunpack.c.h.b16 %v384
    %v465 = vunpack.c.l.b16 %v385
    %v466 = vunpack.c.h.b16 %v385
    %v467 = vunpack.c.l.b16 %v386
    %v468 = vunpack.c.h.b16 %v386
    %v469 = vunpack.c.l.b16 %v387
    %v470 = vunpack.c.h.b16 %v387
    %v471 = vunpack.c.l.b16 %v388
    %v472 = vunpack.c.h.b16 %v388
    %v473 = vunpack.c.l.b16 %v389
    %v474 = vunpack.c.h.b16 %v389
    %v475 = vunpack.c.l.b16 %v390
    %v476 = vunpack.c.h.b16 %v390
    %v477 = vunpack.c.l.b16 %v391
    %v478 = vunpack.c.h.b16 %v391
    %v479 = vunpack.c.l.b16 %v392
    %v480 = vunpack.c.h.b16 %v392
    %v481 = vunpack.c.l.b16 %v393
    %v482 = vunpack.c.h.b16 %v393
    %v483 = vunpack.c.l.b16 %v394
    %v484 = vunpack.c.h.b16 %v394
    %v485 = vunpack.c.l.b16 %v395
    %v486 = vunpack.c.h.b16 %v395
    %v487 = vunpack.c.l.b16 %v396
    %v488 = vunpack.c.h.b16 %v396
    %v489 = vunpack.c.l.b16 %v397
    %v490 = vunpack.c.h.b16 %v397
    %v491 = vunpack.c.l.b16 %v398
    %v492 = vunpack.c.h.b16 %v398
    %v493 = vunpack.c.l.b16 %v399
    %v494 = vunpack.c.h.b16 %v399
    %v495 = vunpack.c.l.b16 %v400
    %v496 = vunpack.c.h.b16 %v400
    %v497 = vpack.c.b16 %v437, %v433
    %v498 = vpack.c.b16 %v438, %v434
    %v499 = vpack.c.b16 %v439, %v435
    %v500 = vpack.c.b16 %v440, %v436
    %v501 = vpack.c.b16 %v445, %v441
    %v502 = vpack.c.b16 %v446, %v442
    %v503 = vpack.c.b16 %v447, %v443
    %v504 = vpack.c.b16 %v448, %v444
    %v505 = vpack.c.b16 %v453, %v449
    %v506 = vpack.c.b16 %v454, %v450
    %v507 = vpack.c.b16 %v455, %v451
    %v508 = vpack.c.b16 %v456, %v452
    %v509 = vpack.c.b16 %v461, %v457
    %v510 = vpack.c.b16 %v462, %v458
    %v511 = vpack.c.b16 %v463, %v459
    %v512 = vpack.c.b16 %v464, %v460
    %v513 = vpack.c.b16 %v469, %v465
    %v514 = vpack.c.b16 %v470, %v466
    %v515 = vpack.c.b16 %v471, %v467
    %v516 = vpack.c.b16 %v472, %v468
    %v517 = vpack.c.b16 %v477, %v473
    %v518 = vpack.c.b16 %v478, %v474
    %v519 = vpack.c.b16 %v479, %v475
    %v520 = vpack.c.b16 %v480, %v476
    %v521 = vpack.c.b16 %v485, %v481
    %v522 = vpack.c.b16 %v486, %v482
    %v523 = vpack.c.b16 %v487, %v483
    %v524 = vpack.c.b16 %v488, %v484
    %v525 = vpack.c.b16 %v493, %v489
    %v526 = vpack.c.b16 %v494, %v490
    %v527 = vpack.c.b16 %v495, %v491
    %v528 = vpack.c.b16 %v496, %v492
    %561 = vmatprep.subr.bf16.mxu0 %v498
    %562 = vmatpush1.bf16.msra.mxu0 %v497
    %563 = vmatprep.subr.bf16.mxu0 %v502
    %564 = vmatpush1.bf16.msra.mxu0 %v501
    %565 = vmatprep.subr.bf16.mxu0 %v506
    %566 = vmatpush1.bf16.msra.mxu0 %v505
    %567 = vmatprep.subr.bf16.mxu0 %v510
    %568 = vmatpush1.bf16.msra.mxu0 %v509
    %569 = vmatprep.subr.bf16.mxu0 %v514
    %570 = vmatpush1.bf16.msra.mxu0 %v513
    %571 = vmatprep.subr.bf16.mxu0 %v518
    %572 = vmatpush1.bf16.msra.mxu0 %v517
    %573 = vmatprep.subr.bf16.mxu0 %v522
    %574 = vmatpush1.bf16.msra.mxu0 %v521
    %575 = vmatprep.subr.bf16.mxu0 %v526
    %576 = vmatpush1.bf16.msra.mxu0 %v525
    %577 = vmatprep.subr.bf16.mxu0 0
    %578 = vmatpush1.bf16.msra.mxu0 0
    %579 = vmatprep.subr.bf16.mxu0 0
    %580 = vmatpush1.bf16.msra.mxu0 0
    %581 = vmatprep.subr.bf16.mxu0 0
    %582 = vmatpush1.bf16.msra.mxu0 0
    %583 = vmatprep.subr.bf16.mxu0 0
    %584 = vmatpush1.bf16.msra.mxu0 0
    %585 = vmatprep.subr.bf16.mxu0 0
    %586 = vmatpush1.bf16.msra.mxu0 0
    %587 = vmatprep.subr.bf16.mxu0 0
    %588 = vmatpush1.bf16.msra.mxu0 0
    %589 = vmatprep.subr.bf16.mxu0 0
    %590 = vmatpush1.bf16.msra.mxu0 0
    %591 = vmatprep.subr.bf16.mxu0 0
    %592 = vmatpush1.bf16.msra.mxu0 0
    %593 = vmatprep.mubr.bf16.mxu0 0
    %594 = vmatmul.mubr.bf16.gmra.mrb[0].mxu0 0
    %v595 = vpop.f32.mrb[0].mxu0
    %v596 = vadd.f32 0.0, %v595
    %v597 = vpop.f32.mrb[0].mxu0
    %v598 = vadd.f32 0.0, %v597
    %v599 = vpop.f32.mrb[0].mxu0
    %v600 = vpop.f32.mrb[0].mxu0
    %601 = vdwg.mxu0
    %602 = vmatprep.subr.bf16.mxu0 %v500
    %603 = vmatpush1.bf16.msra.mxu0 %v499
    %604 = vmatprep.subr.bf16.mxu0 %v504
    %605 = vmatpush1.bf16.msra.mxu0 %v503
    %606 = vmatprep.subr.bf16.mxu0 %v508
    %607 = vmatpush1.bf16.msra.mxu0 %v507
    %608 = vmatprep.subr.bf16.mxu0 %v512
    %609 = vmatpush1.bf16.msra.mxu0 %v511
    %610 = vmatprep.subr.bf16.mxu0 %v516
    %611 = vmatpush1.bf16.msra.mxu0 %v515
    %612 = vmatprep.subr.bf16.mxu0 %v520
    %613 = vmatpush1.bf16.msra.mxu0 %v519
    %614 = vmatprep.subr.bf16.mxu0 %v524
    %615 = vmatpush1.bf16.msra.mxu0 %v523
    %616 = vmatprep.subr.bf16.mxu0 %v528
    %617 = vmatpush1.bf16.msra.mxu0 %v527
    %618 = vmatprep.subr.bf16.mxu0 0
    %619 = vmatpush1.bf16.msra.mxu0 0
    %620 = vmatprep.subr.bf16.mxu0 0
    %621 = vmatpush1.bf16.msra.mxu0 0
    %622 = vmatprep.subr.bf16.mxu0 0
    %623 = vmatpush1.bf16.msra.mxu0 0
    %624 = vmatprep.subr.bf16.mxu0 0
    %625 = vmatpush1.bf16.msra.mxu0 0
    %626 = vmatprep.subr.bf16.mxu0 0
    %627 = vmatpush1.bf16.msra.mxu0 0
    %628 = vmatprep.subr.bf16.mxu0 0
    %629 = vmatpush1.bf16.msra.mxu0 0
    %630 = vmatprep.subr.bf16.mxu0 0
    %631 = vmatpush1.bf16.msra.mxu0 0
    %632 = vmatprep.subr.bf16.mxu0 0
    %633 = vmatpush1.bf16.msra.mxu0 0
    %634 = vmatprep.mubr.bf16.mxu0 0
    %635 = vmatmul.mubr.bf16.gmra.mrb[0].mxu0 0
    %v636 = vpop.f32.mrb[0].mxu0
    %v637 = vadd.f32 0.0, %v636
    %v638 = vpop.f32.mrb[0].mxu0
    %v639 = vadd.f32 0.0, %v638
    %v640 = vpop.f32.mrb[0].mxu0
    %v641 = vpop.f32.mrb[0].mxu0
    %642 = vdwg.mxu0
    %v643 = vadd.f32 %v322, %v596
    %v644 = vadd.f32 %v324, %v598
    %v645 = vadd.f32 %v363, %v637
    %v646 = vadd.f32 %v365, %v639
    %v647 = vmul.f32 %v643, 0.5
    %v648 = vtanh.pop %v647
    %v649 = vmul.f32 %v648, 0.5
    %v650 = vadd.f32 %v649, 0.5
    %v651 = vmul.f32 %v644, 0.5
    %v652 = vtanh.pop %v651
    %v653 = vmul.f32 %v652, 0.5
    %v654 = vadd.f32 %v653, 0.5
    %v655 = vtanh.pop %v645
    %v656 = vmul.f32 %v646, 0.5
    %v657 = vtanh.pop %v656
    %v658 = vmul.f32 %v657, 0.5
    %v659 = vadd.f32 %v658, 0.5
    %v660 = vmul.f32 %v654, 0.0
    %v661 = vmul.f32 %v650, %v655
    %v662 = vadd.f32 %v660, %v661
    %v663 = vtanh.pop %v662
    %v664 = vmul.f32 %v659, %v663
    %v665 = vpack.c.bf16 %v664, %v664
    %s666 = scalar_lea.vmem %s0, 4
    %v667 = vld [vmem:[%s666] sm:$0xf]
    %668 = vmatprep.subr.bf16.mxu0 %v224
    %669 = vmatpush1.bf16.msra.mxu0 %v223
    %670 = vmatprep.subr.bf16.mxu0 %v228
    %671 = vmatpush1.bf16.msra.mxu0 %v227
    %672 = vmatprep.subr.bf16.mxu0 %v232
    %673 = vmatpush1.bf16.msra.mxu0 %v231
    %674 = vmatprep.subr.bf16.mxu0 %v236
    %675 = vmatpush1.bf16.msra.mxu0 %v235
    %676 = vmatprep.subr.bf16.mxu0 %v240
    %677 = vmatpush1.bf16.msra.mxu0 %v239
    %678 = vmatprep.subr.bf16.mxu0 %v244
    %679 = vmatpush1.bf16.msra.mxu0 %v243
    %680 = vmatprep.subr.bf16.mxu0 %v248
    %681 = vmatpush1.bf16.msra.mxu0 %v247
    %682 = vmatprep.subr.bf16.mxu0 %v252
    %683 = vmatpush1.bf16.msra.mxu0 %v251
    %684 = vmatprep.subr.bf16.mxu0 0
    %685 = vmatpush1.bf16.msra.mxu0 0
    %686 = vmatprep.subr.bf16.mxu0 0
    %687 = vmatpush1.bf16.msra.mxu0 0
    %688 = vmatprep.subr.bf16.mxu0 0
    %689 = vmatpush1.bf16.msra.mxu0 0
    %690 = vmatprep.subr.bf16.mxu0 0
    %691 = vmatpush1.bf16.msra.mxu0 0
    %692 = vmatprep.subr.bf16.mxu0 0
    %693 = vmatpush1.bf16.msra.mxu0 0
    %694 = vmatprep.subr.bf16.mxu0 0
    %695 = vmatpush1.bf16.msra.mxu0 0
    %696 = vmatprep.subr.bf16.mxu0 0
    %697 = vmatpush1.bf16.msra.mxu0 0
    %698 = vmatprep.subr.bf16.mxu0 0
    %699 = vmatpush1.bf16.msra.mxu0 0
    %700 = vmatprep.mubr.bf16.mxu0 0
    %701 = vmatmul.mubr.bf16.gmra.mrb[0].mxu0 %v667
    %v702 = vpop.f32.mrb[0].mxu0
    %v703 = vadd.f32 %v110, %v702
    %v704 = vpop.f32.mrb[0].mxu0
    %v705 = vadd.f32 %v114, %v704
    %v706 = vpop.f32.mrb[0].mxu0
    %v707 = vpop.f32.mrb[0].mxu0
    %708 = vdwg.mxu0
    %709 = vmatprep.subr.bf16.mxu0 %v226
    %710 = vmatpush1.bf16.msra.mxu0 %v225
    %711 = vmatprep.subr.bf16.mxu0 %v230
    %712 = vmatpush1.bf16.msra.mxu0 %v229
    %713 = vmatprep.subr.bf16.mxu0 %v234
    %714 = vmatpush1.bf16.msra.mxu0 %v233
    %715 = vmatprep.subr.bf16.mxu0 %v238
    %716 = vmatpush1.bf16.msra.mxu0 %v237
    %717 = vmatprep.subr.bf16.mxu0 %v242
    %718 = vmatpush1.bf16.msra.mxu0 %v241
    %719 = vmatprep.subr.bf16.mxu0 %v246
    %720 = vmatpush1.bf16.msra.mxu0 %v245
    %721 = vmatprep.subr.bf16.mxu0 %v250
    %722 = vmatpush1.bf16.msra.mxu0 %v249
    %723 = vmatprep.subr.bf16.mxu0 %v254
    %724 = vmatpush1.bf16.msra.mxu0 %v253
    %725 = vmatprep.subr.bf16.mxu0 0
    %726 = vmatpush1.bf16.msra.mxu0 0
    %727 = vmatprep.subr.bf16.mxu0 0
    %728 = vmatpush1.bf16.msra.mxu0 0
    %729 = vmatprep.subr.bf16.mxu0 0
    %730 = vmatpush1.bf16.msra.mxu0 0
    %731 = vmatprep.subr.bf16.mxu0 0
    %732 = vmatpush1.bf16.msra.mxu0 0
    %733 = vmatprep.subr.bf16.mxu0 0
    %734 = vmatpush1.bf16.msra.mxu0 0
    %735 = vmatprep.subr.bf16.mxu0 0
    %736 = vmatpush1.bf16.msra.mxu0 0
    %737 = vmatprep.subr.bf16.mxu0 0
    %738 = vmatpush1.bf16.msra.mxu0 0
    %739 = vmatprep.subr.bf16.mxu0 0
    %740 = vmatpush1.bf16.msra.mxu0 0
    %741 = vmatprep.mubr.bf16.mxu0 0
    %742 = vmatmul.mubr.bf16.gmra.mrb[0].mxu0 %v667
    %v743 = vpop.f32.mrb[0].mxu0
    %v744 = vadd.f32 %v118, %v743
    %v745 = vpop.f32.mrb[0].mxu0
    %v746 = vadd.f32 %v122, %v745
    %v747 = vpop.f32.mrb[0].mxu0
    %v748 = vpop.f32.mrb[0].mxu0
    %749 = vdwg.mxu0
    %750 = vmatprep.subr.bf16.mxu0 %v498
    %751 = vmatpush1.bf16.msra.mxu0 %v497
    %752 = vmatprep.subr.bf16.mxu0 %v502
    %753 = vmatpush1.bf16.msra.mxu0 %v501
    %754 = vmatprep.subr.bf16.mxu0 %v506
    %755 = vmatpush1.bf16.msra.mxu0 %v505
    %756 = vmatprep.subr.bf16.mxu0 %v510
    %757 = vmatpush1.bf16.msra.mxu0 %v509
    %758 = vmatprep.subr.bf16.mxu0 %v514
    %759 = vmatpush1.bf16.msra.mxu0 %v513
    %760 = vmatprep.subr.bf16.mxu0 %v518
    %761 = vmatpush1.bf16.msra.mxu0 %v517
    %762 = vmatprep.subr.bf16.mxu0 %v522
    %763 = vmatpush1.bf16.msra.mxu0 %v521
    %764 = vmatprep.subr.bf16.mxu0 %v526
    %765 = vmatpush1.bf16.msra.mxu0 %v525
    %766 = vmatprep.subr.bf16.mxu0 0
    %767 = vmatpush1.bf16.msra.mxu0 0
    %768 = vmatprep.subr.bf16.mxu0 0
    %769 = vmatpush1.bf16.msra.mxu0 0
    %770 = vmatprep.subr.bf16.mxu0 0
    %771 = vmatpush1.bf16.msra.mxu0 0
    %772 = vmatprep.subr.bf16.mxu0 0
    %773 = vmatpush1.bf16.msra.mxu0 0
    %774 = vmatprep.subr.bf16.mxu0 0
    %775 = vmatpush1.bf16.msra.mxu0 0
    %776 = vmatprep.subr.bf16.mxu0 0
    %777 = vmatpush1.bf16.msra.mxu0 0
    %778 = vmatprep.subr.bf16.mxu0 0
    %779 = vmatpush1.bf16.msra.mxu0 0
    %780 = vmatprep.subr.bf16.mxu0 0
    %781 = vmatpush1.bf16.msra.mxu0 0
    %782 = vmatprep.mubr.bf16.mxu0 0
    %783 = vmatmul.mubr.bf16.gmra.mrb[0].mxu0 %v665
    %v784 = vpop.f32.mrb[0].mxu0
    %v785 = vadd.f32 0.0, %v784
    %v786 = vpop.f32.mrb[0].mxu0
    %v787 = vadd.f32 0.0, %v786
    %v788 = vpop.f32.mrb[0].mxu0
    %v789 = vpop.f32.mrb[0].mxu0
    %790 = vdwg.mxu0
    %791 = vmatprep.subr.bf16.mxu0 %v500
    %792 = vmatpush1.bf16.msra.mxu0 %v499
    %793 = vmatprep.subr.bf16.mxu0 %v504
    %794 = vmatpush1.bf16.msra.mxu0 %v503
    %795 = vmatprep.subr.bf16.mxu0 %v508
    %796 = vmatpush1.bf16.msra.mxu0 %v507
    %797 = vmatprep.subr.bf16.mxu0 %v512
    %798 = vmatpush1.bf16.msra.mxu0 %v511
    %799 = vmatprep.subr.bf16.mxu0 %v516
    %800 = vmatpush1.bf16.msra.mxu0 %v515
    %801 = vmatprep.subr.bf16.mxu0 %v520
    %802 = vmatpush1.bf16.msra.mxu0 %v519
    %803 = vmatprep.subr.bf16.mxu0 %v524
    %804 = vmatpush1.bf16.msra.mxu0 %v523
    %805 = vmatprep.subr.bf16.mxu0 %v528
    %806 = vmatpush1.bf16.msra.mxu0 %v527
    %807 = vmatprep.subr.bf16.mxu0 0
    %808 = vmatpush1.bf16.msra.mxu0 0
    %809 = vmatprep.subr.bf16.mxu0 0
    %810 = vmatpush1.bf16.msra.mxu0 0
    %811 = vmatprep.subr.bf16.mxu0 0
    %812 = vmatpush1.bf16.msra.mxu0 0
    %813 = vmatprep.subr.bf16.mxu0 0
    %814 = vmatpush1.bf16.msra.mxu0 0
    %815 = vmatprep.subr.bf16.mxu0 0
    %816 = vmatpush1.bf16.msra.mxu0 0
    %817 = vmatprep.subr.bf16.mxu0 0
    %818 = vmatpush1.bf16.msra.mxu0 0
    %819 = vmatprep.subr.bf16.mxu0 0
    %820 = vmatpush1.bf16.msra.mxu0 0
    %821 = vmatprep.subr.bf16.mxu0 0
    %822 = vmatpush1.bf16.msra.mxu0 0
    %823 = vmatprep.mubr.bf16.mxu0 0
    %824 = vmatmul.mubr.bf16.gmra.mrb[0].mxu0 %v665
    %v825 = vpop.f32.mrb[0].mxu0
    %v826 = vadd.f32 0.0, %v825
    %v827 = vpop.f32.mrb[0].mxu0
    %v828 = vadd.f32 0.0, %v827
    %v829 = vpop.f32.mrb[0].mxu0
    %v830 = vpop.f32.mrb[0].mxu0
    %831 = vdwg.mxu0
    %v832 = vadd.f32 %v703, %v785
    %v833 = vadd.f32 %v705, %v787
    %v834 = vadd.f32 %v744, %v826
    %v835 = vadd.f32 %v746, %v828
    %v836 = vmul.f32 %v832, 0.5
    %v837 = vtanh.pop %v836
    %v838 = vmul.f32 %v837, 0.5
    %v839 = vadd.f32 %v838, 0.5
    %v840 = vmul.f32 %v833, 0.5
    %v841 = vtanh.pop %v840
    %v842 = vmul.f32 %v841, 0.5
    %v843 = vadd.f32 %v842, 0.5
    %v844 = vtanh.pop %v834
    %v845 = vmul.f32 %v835, 0.5
    %v846 = vtanh.pop %v845
    %v847 = vmul.f32 %v846, 0.5
    %v848 = vadd.f32 %v847, 0.5
    %v849 = vmul.f32 %v843, %v662
    %v850 = vmul.f32 %v839, %v844
    %v851 = vadd.f32 %v849, %v850
    %v852 = vtanh.pop %v851
    %v853 = vmul.f32 %v848, %v852
    %v854 = vpack.c.bf16 %v853, %v853
    %s855 = scalar_lea.vmem %s0, 8
    %v856 = vld [vmem:[%s855] sm:$0xf]
    %857 = vmatprep.subr.bf16.mxu0 %v224
    %858 = vmatpush1.bf16.msra.mxu0 %v223
    %859 = vmatprep.subr.bf16.mxu0 %v228
    %860 = vmatpush1.bf16.msra.mxu0 %v227
    %861 = vmatprep.subr.bf16.mxu0 %v232
    %862 = vmatpush1.bf16.msra.mxu0 %v231
    %863 = vmatprep.subr.bf16.mxu0 %v236
    %864 = vmatpush1.bf16.msra.mxu0 %v235
    %865 = vmatprep.subr.bf16.mxu0 %v240
    %866 = vmatpush1.bf16.msra.mxu0 %v239
    %867 = vmatprep.subr.bf16.mxu0 %v244
    %868 = vmatpush1.bf16.msra.mxu0 %v243
    %869 = vmatprep.subr.bf16.mxu0 %v248
    %870 = vmatpush1.bf16.msra.mxu0 %v247
    %871 = vmatprep.subr.bf16.mxu0 %v252
    %872 = vmatpush1.bf16.msra.mxu0 %v251
    %873 = vmatprep.subr.bf16.mxu0 0
    %874 = vmatpush1.bf16.msra.mxu0 0
    %875 = vmatprep.subr.bf16.mxu0 0
    %876 = vmatpush1.bf16.msra.mxu0 0
    %877 = vmatprep.subr.bf16.mxu0 0
    %878 = vmatpush1.bf16.msra.mxu0 0
    %879 = vmatprep.subr.bf16.mxu0 0
    %880 = vmatpush1.bf16.msra.mxu0 0
    %881 = vmatprep.subr.bf16.mxu0 0
    %882 = vmatpush1.bf16.msra.mxu0 0
    %883 = vmatprep.subr.bf16.mxu0 0
    %884 = vmatpush1.bf16.msra.mxu0 0
    %885 = vmatprep.subr.bf16.mxu0 0
    %886 = vmatpush1.bf16.msra.mxu0 0
    %887 = vmatprep.subr.bf16.mxu0 0
    %888 = vmatpush1.bf16.msra.mxu0 0
    %889 = vmatprep.mubr.bf16.mxu0 0
    %890 = vmatmul.mubr.bf16.gmra.mrb[0].mxu0 %v856
    %v891 = vpop.f32.mrb[0].mxu0
    %v892 = vadd.f32 %v110, %v891
    %v893 = vpop.f32.mrb[0].mxu0
    %v894 = vadd.f32 %v114, %v893
    %v895 = vpop.f32.mrb[0].mxu0
    %v896 = vpop.f32.mrb[0].mxu0
    %897 = vdwg.mxu0
    %898 = vmatprep.subr.bf16.mxu0 %v226
    %899 = vmatpush1.bf16.msra.mxu0 %v225
    %900 = vmatprep.subr.bf16.mxu0 %v230
    %901 = vmatpush1.bf16.msra.mxu0 %v229
    %902 = vmatprep.subr.bf16.mxu0 %v234
    %903 = vmatpush1.bf16.msra.mxu0 %v233
    %904 = vmatprep.subr.bf16.mxu0 %v238
    %905 = vmatpush1.bf16.msra.mxu0 %v237
    %906 = vmatprep.subr.bf16.mxu0 %v242
    %907 = vmatpush1.bf16.msra.mxu0 %v241
    %908 = vmatprep.subr.bf16.mxu0 %v246
    %909 = vmatpush1.bf16.msra.mxu0 %v245
    %910 = vmatprep.subr.bf16.mxu0 %v250
    %911 = vmatpush1.bf16.msra.mxu0 %v249
    %912 = vmatprep.subr.bf16.mxu0 %v254
    %913 = vmatpush1.bf16.msra.mxu0 %v253
    %914 = vmatprep.subr.bf16.mxu0 0
    %915 = vmatpush1.bf16.msra.mxu0 0
    %916 = vmatprep.subr.bf16.mxu0 0
    %917 = vmatpush1.bf16.msra.mxu0 0
    %918 = vmatprep.subr.bf16.mxu0 0
    %919 = vmatpush1.bf16.msra.mxu0 0
    %920 = vmatprep.subr.bf16.mxu0 0
    %921 = vmatpush1.bf16.msra.mxu0 0
    %922 = vmatprep.subr.bf16.mxu0 0
    %923 = vmatpush1.bf16.msra.mxu0 0
    %924 = vmatprep.subr.bf16.mxu0 0
    %925 = vmatpush1.bf16.msra.mxu0 0
    %926 = vmatprep.subr.bf16.mxu0 0
    %927 = vmatpush1.bf16.msra.mxu0 0
    %928 = vmatprep.subr.bf16.mxu0 0
    %929 = vmatpush1.bf16.msra.mxu0 0
    %930 = vmatprep.mubr.bf16.mxu0 0
    %931 = vmatmul.mubr.bf16.gmra.mrb[0].mxu0 %v856
    %v932 = vpop.f32.mrb[0].mxu0
    %v933 = vadd.f32 %v118, %v932
    %v934 = vpop.f32.mrb[0].mxu0
    %v935 = vadd.f32 %v122, %v934
    %v936 = vpop.f32.mrb[0].mxu0
    %v937 = vpop.f32.mrb[0].mxu0
    %938 = vdwg.mxu0
    %939 = vmatprep.subr.bf16.mxu0 %v498
    %940 = vmatpush1.bf16.msra.mxu0 %v497
    %941 = vmatprep.subr.bf16.mxu0 %v502
    %942 = vmatpush1.bf16.msra.mxu0 %v501
    %943 = vmatprep.subr.bf16.mxu0 %v506
    %944 = vmatpush1.bf16.msra.mxu0 %v505
    %945 = vmatprep.subr.bf16.mxu0 %v510
    %946 = vmatpush1.bf16.msra.mxu0 %v509
    %947 = vmatprep.subr.bf16.mxu0 %v514
    %948 = vmatpush1.bf16.msra.mxu0 %v513
    %949 = vmatprep.subr.bf16.mxu0 %v518
    %950 = vmatpush1.bf16.msra.mxu0 %v517
    %951 = vmatprep.subr.bf16.mxu0 %v522
    %952 = vmatpush1.bf16.msra.mxu0 %v521
    %953 = vmatprep.subr.bf16.mxu0 %v526
    %954 = vmatpush1.bf16.msra.mxu0 %v525
    %955 = vmatprep.subr.bf16.mxu0 0
    %956 = vmatpush1.bf16.msra.mxu0 0
    %957 = vmatprep.subr.bf16.mxu0 0
    %958 = vmatpush1.bf16.msra.mxu0 0
    %959 = vmatprep.subr.bf16.mxu0 0
    %960 = vmatpush1.bf16.msra.mxu0 0
    %961 = vmatprep.subr.bf16.mxu0 0
    %962 = vmatpush1.bf16.msra.mxu0 0
    %963 = vmatprep.subr.bf16.mxu0 0
    %964 = vmatpush1.bf16.msra.mxu0 0
    %965 = vmatprep.subr.bf16.mxu0 0
    %966 = vmatpush1.bf16.msra.mxu0 0
    %967 = vmatprep.subr.bf16.mxu0 0
    %968 = vmatpush1.bf16.msra.mxu0 0
    %969 = vmatprep.subr.bf16.mxu0 0
    %970 = vmatpush1.bf16.msra.mxu0 0
    %971 = vmatprep.mubr.bf16.mxu0 0
    %972 = vmatmul.mubr.bf16.gmra.mrb[0].mxu0 %v854
    %v973 = vpop.f32.mrb[0].mxu0
    %v974 = vadd.f32 0.0, %v973
    %v975 = vpop.f32.mrb[0].mxu0
    %v976 = vadd.f32 0.0, %v975
    %v977 = vpop.f32.mrb[0].mxu0
    %v978 = vpop.f32.mrb[0].mxu0
    %979 = vdwg.mxu0
    %980 = vmatprep.subr.bf16.mxu0 %v500
    %981 = vmatpush1.bf16.msra.mxu0 %v499
    %982 = vmatprep.subr.bf16.mxu0 %v504
    %983 = vmatpush1.bf16.msra.mxu0 %v503
    %984 = vmatprep.subr.bf16.mxu0 %v508
    %985 = vmatpush1.bf16.msra.mxu0 %v507
    %986 = vmatprep.subr.bf16.mxu0 %v512
    %987 = vmatpush1.bf16.msra.mxu0 %v511
    %988 = vmatprep.subr.bf16.mxu0 %v516
    %989 = vmatpush1.bf16.msra.mxu0 %v515
    %990 = vmatprep.subr.bf16.mxu0 %v520
    %991 = vmatpush1.bf16.msra.mxu0 %v519
    %992 = vmatprep.subr.bf16.mxu0 %v524
    %993 = vmatpush1.bf16.msra.mxu0 %v523
    %994 = vmatprep.subr.bf16.mxu0 %v528
    %995 = vmatpush1.bf16.msra.mxu0 %v527
    %996 = vmatprep.subr.bf16.mxu0 0
    %997 = vmatpush1.bf16.msra.mxu0 0
    %998 = vmatprep.subr.bf16.mxu0 0
    %999 = vmatpush1.bf16.msra.mxu0 0
    %1000 = vmatprep.subr.bf16.mxu0 0
    %1001 = vmatpush1.bf16.msra.mxu0 0
    %1002 = vmatprep.subr.bf16.mxu0 0
    %1003 = vmatpush1.bf16.msra.mxu0 0
    %1004 = vmatprep.subr.bf16.mxu0 0
    %1005 = vmatpush1.bf16.msra.mxu0 0
    %1006 = vmatprep.subr.bf16.mxu0 0
    %1007 = vmatpush1.bf16.msra.mxu0 0
    %1008 = vmatprep.subr.bf16.mxu0 0
    %1009 = vmatpush1.bf16.msra.mxu0 0
    %1010 = vmatprep.subr.bf16.mxu0 0
    %1011 = vmatpush1.bf16.msra.mxu0 0
    %1012 = vmatprep.mubr.bf16.mxu0 0
    %1013 = vmatmul.mubr.bf16.gmra.mrb[0].mxu0 %v854
    %v1014 = vpop.f32.mrb[0].mxu0
    %v1015 = vadd.f32 0.0, %v1014
    %v1016 = vpop.f32.mrb[0].mxu0
    %v1017 = vadd.f32 0.0, %v1016
    %v1018 = vpop.f32.mrb[0].mxu0
    %v1019 = vpop.f32.mrb[0].mxu0
    %1020 = vdwg.mxu0
    %v1021 = vadd.f32 %v892, %v974
    %v1022 = vadd.f32 %v894, %v976
    %v1023 = vadd.f32 %v933, %v1015
    %v1024 = vadd.f32 %v935, %v1017
    %v1025 = vmul.f32 %v1021, 0.5
    %v1026 = vtanh.pop %v1025
    %v1027 = vmul.f32 %v1026, 0.5
    %v1028 = vadd.f32 %v1027, 0.5
    %v1029 = vmul.f32 %v1022, 0.5
    %v1030 = vtanh.pop %v1029
    %v1031 = vmul.f32 %v1030, 0.5
    %v1032 = vadd.f32 %v1031, 0.5
    %v1033 = vtanh.pop %v1023
    %v1034 = vmul.f32 %v1024, 0.5
    %v1035 = vtanh.pop %v1034
    %v1036 = vmul.f32 %v1035, 0.5
    %v1037 = vadd.f32 %v1036, 0.5
    %v1038 = vmul.f32 %v1032, %v851
    %v1039 = vmul.f32 %v1028, %v1033
    %v1040 = vadd.f32 %v1038, %v1039
    %v1041 = vtanh.pop %v1040
    %v1042 = vmul.f32 %v1037, %v1041
    %v1043 = vpack.c.bf16 %v1042, %v1042
    %s1044 = scalar_lea.vmem %s0, 12
    %v1045 = vld [vmem:[%s1044] sm:$0xf]
    %1046 = vmatprep.subr.bf16.mxu0 %v224
    %1047 = vmatpush1.bf16.msra.mxu0 %v223
    %1048 = vmatprep.subr.bf16.mxu0 %v228
    %1049 = vmatpush1.bf16.msra.mxu0 %v227
    %1050 = vmatprep.subr.bf16.mxu0 %v232
    %1051 = vmatpush1.bf16.msra.mxu0 %v231
    %1052 = vmatprep.subr.bf16.mxu0 %v236
    %1053 = vmatpush1.bf16.msra.mxu0 %v235
    %1054 = vmatprep.subr.bf16.mxu0 %v240
    %1055 = vmatpush1.bf16.msra.mxu0 %v239
    %1056 = vmatprep.subr.bf16.mxu0 %v244
    %1057 = vmatpush1.bf16.msra.mxu0 %v243
    %1058 = vmatprep.subr.bf16.mxu0 %v248
    %1059 = vmatpush1.bf16.msra.mxu0 %v247
    %1060 = vmatprep.subr.bf16.mxu0 %v252
    %1061 = vmatpush1.bf16.msra.mxu0 %v251
    %1062 = vmatprep.subr.bf16.mxu0 0
    %1063 = vmatpush1.bf16.msra.mxu0 0
    %1064 = vmatprep.subr.bf16.mxu0 0
    %1065 = vmatpush1.bf16.msra.mxu0 0
    %1066 = vmatprep.subr.bf16.mxu0 0
    %1067 = vmatpush1.bf16.msra.mxu0 0
    %1068 = vmatprep.subr.bf16.mxu0 0
    %1069 = vmatpush1.bf16.msra.mxu0 0
    %1070 = vmatprep.subr.bf16.mxu0 0
    %1071 = vmatpush1.bf16.msra.mxu0 0
    %1072 = vmatprep.subr.bf16.mxu0 0
    %1073 = vmatpush1.bf16.msra.mxu0 0
    %1074 = vmatprep.subr.bf16.mxu0 0
    %1075 = vmatpush1.bf16.msra.mxu0 0
    %1076 = vmatprep.subr.bf16.mxu0 0
    %1077 = vmatpush1.bf16.msra.mxu0 0
    %1078 = vmatprep.mubr.bf16.mxu0 0
    %1079 = vmatmul.mubr.bf16.gmra.mrb[0].mxu0 %v1045
    %v1080 = vpop.f32.mrb[0].mxu0
    %v1081 = vadd.f32 %v110, %v1080
    %v1082 = vpop.f32.mrb[0].mxu0
    %v1083 = vadd.f32 %v114, %v1082
    %v1084 = vpop.f32.mrb[0].mxu0
    %v1085 = vpop.f32.mrb[0].mxu0
    %1086 = vdwg.mxu0
    %1087 = vmatprep.subr.bf16.mxu0 %v226
    %1088 = vmatpush1.bf16.msra.mxu0 %v225
    %1089 = vmatprep.subr.bf16.mxu0 %v230
    %1090 = vmatpush1.bf16.msra.mxu0 %v229
    %1091 = vmatprep.subr.bf16.mxu0 %v234
    %1092 = vmatpush1.bf16.msra.mxu0 %v233
    %1093 = vmatprep.subr.bf16.mxu0 %v238
    %1094 = vmatpush1.bf16.msra.mxu0 %v237
    %1095 = vmatprep.subr.bf16.mxu0 %v242
    %1096 = vmatpush1.bf16.msra.mxu0 %v241
    %1097 = vmatprep.subr.bf16.mxu0 %v246
    %1098 = vmatpush1.bf16.msra.mxu0 %v245
    %1099 = vmatprep.subr.bf16.mxu0 %v250
    %1100 = vmatpush1.bf16.msra.mxu0 %v249
    %1101 = vmatprep.subr.bf16.mxu0 %v254
    %1102 = vmatpush1.bf16.msra.mxu0 %v253
    %1103 = vmatprep.subr.bf16.mxu0 0
    %1104 = vmatpush1.bf16.msra.mxu0 0
    %1105 = vmatprep.subr.bf16.mxu0 0
    %1106 = vmatpush1.bf16.msra.mxu0 0
    %1107 = vmatprep.subr.bf16.mxu0 0
    %1108 = vmatpush1.bf16.msra.mxu0 0
    %1109 = vmatprep.subr.bf16.mxu0 0
    %1110 = vmatpush1.bf16.msra.mxu0 0
    %1111 = vmatprep.subr.bf16.mxu0 0
    %1112 = vmatpush1.bf16.msra.mxu0 0
    %1113 = vmatprep.subr.bf16.mxu0 0
    %1114 = vmatpush1.bf16.msra.mxu0 0
    %1115 = vmatprep.subr.bf16.mxu0 0
    %1116 = vmatpush1.bf16.msra.mxu0 0
    %1117 = vmatprep.subr.bf16.mxu0 0
    %1118 = vmatpush1.bf16.msra.mxu0 0
    %1119 = vmatprep.mubr.bf16.mxu0 0
    %1120 = vmatmul.mubr.bf16.gmra.mrb[0].mxu0 %v1045
    %v1121 = vpop.f32.mrb[0].mxu0
    %v1122 = vadd.f32 %v118, %v1121
    %v1123 = vpop.f32.mrb[0].mxu0
    %v1124 = vadd.f32 %v122, %v1123
    %v1125 = vpop.f32.mrb[0].mxu0
    %v1126 = vpop.f32.mrb[0].mxu0
    %1127 = vdwg.mxu0
    %1128 = vmatprep.subr.bf16.mxu0 %v498
    %1129 = vmatpush1.bf16.msra.mxu0 %v497
    %1130 = vmatprep.subr.bf16.mxu0 %v502
    %1131 = vmatpush1.bf16.msra.mxu0 %v501
    %1132 = vmatprep.subr.bf16.mxu0 %v506
    %1133 = vmatpush1.bf16.msra.mxu0 %v505
    %1134 = vmatprep.subr.bf16.mxu0 %v510
    %1135 = vmatpush1.bf16.msra.mxu0 %v509
    %1136 = vmatprep.subr.bf16.mxu0 %v514
    %1137 = vmatpush1.bf16.msra.mxu0 %v513
    %1138 = vmatprep.subr.bf16.mxu0 %v518
    %1139 = vmatpush1.bf16.msra.mxu0 %v517
    %1140 = vmatprep.subr.bf16.mxu0 %v522
    %1141 = vmatpush1.bf16.msra.mxu0 %v521
    %1142 = vmatprep.subr.bf16.mxu0 %v526
    %1143 = vmatpush1.bf16.msra.mxu0 %v525
    %1144 = vmatprep.subr.bf16.mxu0 0
    %1145 = vmatpush1.bf16.msra.mxu0 0
    %1146 = vmatprep.subr.bf16.mxu0 0
    %1147 = vmatpush1.bf16.msra.mxu0 0
    %1148 = vmatprep.subr.bf16.mxu0 0
    %1149 = vmatpush1.bf16.msra.mxu0 0
    %1150 = vmatprep.subr.bf16.mxu0 0
    %1151 = vmatpush1.bf16.msra.mxu0 0
    %1152 = vmatprep.subr.bf16.mxu0 0
    %1153 = vmatpush1.bf16.msra.mxu0 0
    %1154 = vmatprep.subr.bf16.mxu0 0
    %1155 = vmatpush1.bf16.msra.mxu0 0
    %1156 = vmatprep.subr.bf16.mxu0 0
    %1157 = vmatpush1.bf16.msra.mxu0 0
    %1158 = vmatprep.subr.bf16.mxu0 0
    %1159 = vmatpush1.bf16.msra.mxu0 0
    %1160 = vmatprep.mubr.bf16.mxu0 0
    %1161 = vmatmul.mubr.bf16.gmra.mrb[0].mxu0 %v1043
    %v1162 = vpop.f32.mrb[0].mxu0
    %v1163 = vadd.f32 0.0, %v1162
    %v1164 = vpop.f32.mrb[0].mxu0
    %v1165 = vadd.f32 0.0, %v1164
    %v1166 = vpop.f32.mrb[0].mxu0
    %v1167 = vpop.f32.mrb[0].mxu0
    %1168 = vdwg.mxu0
    %1169 = vmatprep.subr.bf16.mxu0 %v500
    %1170 = vmatpush1.bf16.msra.mxu0 %v499
    %1171 = vmatprep.subr.bf16.mxu0 %v504
    %1172 = vmatpush1.bf16.msra.mxu0 %v503
    %1173 = vmatprep.subr.bf16.mxu0 %v508
    %1174 = vmatpush1.bf16.msra.mxu0 %v507
    %1175 = vmatprep.subr.bf16.mxu0 %v512
    %1176 = vmatpush1.bf16.msra.mxu0 %v511
    %1177 = vmatprep.subr.bf16.mxu0 %v516
    %1178 = vmatpush1.bf16.msra.mxu0 %v515
    %1179 = vmatprep.subr.bf16.mxu0 %v520
    %1180 = vmatpush1.bf16.msra.mxu0 %v519
    %1181 = vmatprep.subr.bf16.mxu0 %v524
    %1182 = vmatpush1.bf16.msra.mxu0 %v523
    %1183 = vmatprep.subr.bf16.mxu0 %v528
    %1184 = vmatpush1.bf16.msra.mxu0 %v527
    %1185 = vmatprep.subr.bf16.mxu0 0
    %1186 = vmatpush1.bf16.msra.mxu0 0
    %1187 = vmatprep.subr.bf16.mxu0 0
    %1188 = vmatpush1.bf16.msra.mxu0 0
    %1189 = vmatprep.subr.bf16.mxu0 0
    %1190 = vmatpush1.bf16.msra.mxu0 0
    %1191 = vmatprep.subr.bf16.mxu0 0
    %1192 = vmatpush1.bf16.msra.mxu0 0
    %1193 = vmatprep.subr.bf16.mxu0 0
    %1194 = vmatpush1.bf16.msra.mxu0 0
    %1195 = vmatprep.subr.bf16.mxu0 0
    %1196 = vmatpush1.bf16.msra.mxu0 0
    %1197 = vmatprep.subr.bf16.mxu0 0
    %1198 = vmatpush1.bf16.msra.mxu0 0
    %1199 = vmatprep.subr.bf16.mxu0 0
    %1200 = vmatpush1.bf16.msra.mxu0 0
    %1201 = vmatprep.mubr.bf16.mxu0 0
    %1202 = vmatmul.mubr.bf16.gmra.mrb[0].mxu0 %v1043
    %v1203 = vpop.f32.mrb[0].mxu0
    %v1204 = vadd.f32 0.0, %v1203
    %v1205 = vpop.f32.mrb[0].mxu0
    %v1206 = vadd.f32 0.0, %v1205
    %v1207 = vpop.f32.mrb[0].mxu0
    %v1208 = vpop.f32.mrb[0].mxu0
    %1209 = vdwg.mxu0
    %v1210 = vadd.f32 %v1081, %v1163
    %v1211 = vadd.f32 %v1083, %v1165
    %v1212 = vadd.f32 %v1122, %v1204
    %v1213 = vadd.f32 %v1124, %v1206
    %v1214 = vmul.f32 %v1210, 0.5
    %v1215 = vtanh.pop %v1214
    %v1216 = vmul.f32 %v1215, 0.5
    %v1217 = vadd.f32 %v1216, 0.5
    %v1218 = vmul.f32 %v1211, 0.5
    %v1219 = vtanh.pop %v1218
    %v1220 = vmul.f32 %v1219, 0.5
    %v1221 = vadd.f32 %v1220, 0.5
    %v1222 = vtanh.pop %v1212
    %v1223 = vmul.f32 %v1213, 0.5
    %v1224 = vtanh.pop %v1223
    %v1225 = vmul.f32 %v1224, 0.5
    %v1226 = vadd.f32 %v1225, 0.5
    %v1227 = vmul.f32 %v1221, %v1040
    %v1228 = vmul.f32 %v1217, %v1222
    %v1229 = vadd.f32 %v1227, %v1228
    %v1230 = vtanh.pop %v1229
    %v1231 = vmul.f32 %v1226, %v1230
    %v1232 = vpack.c.bf16 %v1231, %v1231
    %s1233 = scalar_lea.vmem %s0, 16
    %v1234 = vld [vmem:[%s1233] sm:$0xf]
    %1235 = vmatprep.subr.bf16.mxu0 %v224
    %1236 = vmatpush1.bf16.msra.mxu0 %v223
    %1237 = vmatprep.subr.bf16.mxu0 %v228
    %1238 = vmatpush1.bf16.msra.mxu0 %v227
    %1239 = vmatprep.subr.bf16.mxu0 %v232
    %1240 = vmatpush1.bf16.msra.mxu0 %v231
    %1241 = vmatprep.subr.bf16.mxu0 %v236
    %1242 = vmatpush1.bf16.msra.mxu0 %v235
    %1243 = vmatprep.subr.bf16.mxu0 %v240
    %1244 = vmatpush1.bf16.msra.mxu0 %v239
    %1245 = vmatprep.subr.bf16.mxu0 %v244
    %1246 = vmatpush1.bf16.msra.mxu0 %v243
    %1247 = vmatprep.subr.bf16.mxu0 %v248
    %1248 = vmatpush1.bf16.msra.mxu0 %v247
    %1249 = vmatprep.subr.bf16.mxu0 %v252
    %1250 = vmatpush1.bf16.msra.mxu0 %v251
    %1251 = vmatprep.subr.bf16.mxu0 0
    %1252 = vmatpush1.bf16.msra.mxu0 0
    %1253 = vmatprep.subr.bf16.mxu0 0
    %1254 = vmatpush1.bf16.msra.mxu0 0
    %1255 = vmatprep.subr.bf16.mxu0 0
    %1256 = vmatpush1.bf16.msra.mxu0 0
    %1257 = vmatprep.subr.bf16.mxu0 0
    %1258 = vmatpush1.bf16.msra.mxu0 0
    %1259 = vmatprep.subr.bf16.mxu0 0
    %1260 = vmatpush1.bf16.msra.mxu0 0
    %1261 = vmatprep.subr.bf16.mxu0 0
    %1262 = vmatpush1.bf16.msra.mxu0 0
    %1263 = vmatprep.subr.bf16.mxu0 0
    %1264 = vmatpush1.bf16.msra.mxu0 0
    %1265 = vmatprep.subr.bf16.mxu0 0
    %1266 = vmatpush1.bf16.msra.mxu0 0
    %1267 = vmatprep.mubr.bf16.mxu0 0
    %1268 = vmatmul.mubr.bf16.gmra.mrb[0].mxu0 %v1234
    %v1269 = vpop.f32.mrb[0].mxu0
    %v1270 = vadd.f32 %v110, %v1269
    %v1271 = vpop.f32.mrb[0].mxu0
    %v1272 = vadd.f32 %v114, %v1271
    %v1273 = vpop.f32.mrb[0].mxu0
    %v1274 = vpop.f32.mrb[0].mxu0
    %1275 = vdwg.mxu0
    %1276 = vmatprep.subr.bf16.mxu0 %v226
    %1277 = vmatpush1.bf16.msra.mxu0 %v225
    %1278 = vmatprep.subr.bf16.mxu0 %v230
    %1279 = vmatpush1.bf16.msra.mxu0 %v229
    %1280 = vmatprep.subr.bf16.mxu0 %v234
    %1281 = vmatpush1.bf16.msra.mxu0 %v233
    %1282 = vmatprep.subr.bf16.mxu0 %v238
    %1283 = vmatpush1.bf16.msra.mxu0 %v237
    %1284 = vmatprep.subr.bf16.mxu0 %v242
    %1285 = vmatpush1.bf16.msra.mxu0 %v241
    %1286 = vmatprep.subr.bf16.mxu0 %v246
    %1287 = vmatpush1.bf16.msra.mxu0 %v245
    %1288 = vmatprep.subr.bf16.mxu0 %v250
    %1289 = vmatpush1.bf16.msra.mxu0 %v249
    %1290 = vmatprep.subr.bf16.mxu0 %v254
    %1291 = vmatpush1.bf16.msra.mxu0 %v253
    %1292 = vmatprep.subr.bf16.mxu0 0
    %1293 = vmatpush1.bf16.msra.mxu0 0
    %1294 = vmatprep.subr.bf16.mxu0 0
    %1295 = vmatpush1.bf16.msra.mxu0 0
    %1296 = vmatprep.subr.bf16.mxu0 0
    %1297 = vmatpush1.bf16.msra.mxu0 0
    %1298 = vmatprep.subr.bf16.mxu0 0
    %1299 = vmatpush1.bf16.msra.mxu0 0
    %1300 = vmatprep.subr.bf16.mxu0 0
    %1301 = vmatpush1.bf16.msra.mxu0 0
    %1302 = vmatprep.subr.bf16.mxu0 0
    %1303 = vmatpush1.bf16.msra.mxu0 0
    %1304 = vmatprep.subr.bf16.mxu0 0
    %1305 = vmatpush1.bf16.msra.mxu0 0
    %1306 = vmatprep.subr.bf16.mxu0 0
    %1307 = vmatpush1.bf16.msra.mxu0 0
    %1308 = vmatprep.mubr.bf16.mxu0 0
    %1309 = vmatmul.mubr.bf16.gmra.mrb[0].mxu0 %v1234
    %v1310 = vpop.f32.mrb[0].mxu0
    %v1311 = vadd.f32 %v118, %v1310
    %v1312 = vpop.f32.mrb[0].mxu0
    %v1313 = vadd.f32 %v122, %v1312
    %v1314 = vpop.f32.mrb[0].mxu0
    %v1315 = vpop.f32.mrb[0].mxu0
    %1316 = vdwg.mxu0
    %1317 = vmatprep.subr.bf16.mxu0 %v498
    %1318 = vmatpush1.bf16.msra.mxu0 %v497
    %1319 = vmatprep.subr.bf16.mxu0 %v502
    %1320 = vmatpush1.bf16.msra.mxu0 %v501
    %1321 = vmatprep.subr.bf16.mxu0 %v506
    %1322 = vmatpush1.bf16.msra.mxu0 %v505
    %1323 = vmatprep.subr.bf16.mxu0 %v510
    %1324 = vmatpush1.bf16.msra.mxu0 %v509
    %1325 = vmatprep.subr.bf16.mxu0 %v514
    %1326 = vmatpush1.bf16.msra.mxu0 %v513
    %1327 = vmatprep.subr.bf16.mxu0 %v518
    %1328 = vmatpush1.bf16.msra.mxu0 %v517
    %1329 = vmatprep.subr.bf16.mxu0 %v522
    %1330 = vmatpush1.bf16.msra.mxu0 %v521
    %1331 = vmatprep.subr.bf16.mxu0 %v526
    %1332 = vmatpush1.bf16.msra.mxu0 %v525
    %1333 = vmatprep.subr.bf16.mxu0 0
    %1334 = vmatpush1.bf16.msra.mxu0 0
    %1335 = vmatprep.subr.bf16.mxu0 0
    %1336 = vmatpush1.bf16.msra.mxu0 0
    %1337 = vmatprep.subr.bf16.mxu0 0
    %1338 = vmatpush1.bf16.msra.mxu0 0
    %1339 = vmatprep.subr.bf16.mxu0 0
    %1340 = vmatpush1.bf16.msra.mxu0 0
    %1341 = vmatprep.subr.bf16.mxu0 0
    %1342 = vmatpush1.bf16.msra.mxu0 0
    %1343 = vmatprep.subr.bf16.mxu0 0
    %1344 = vmatpush1.bf16.msra.mxu0 0
    %1345 = vmatprep.subr.bf16.mxu0 0
    %1346 = vmatpush1.bf16.msra.mxu0 0
    %1347 = vmatprep.subr.bf16.mxu0 0
    %1348 = vmatpush1.bf16.msra.mxu0 0
    %1349 = vmatprep.mubr.bf16.mxu0 0
    %1350 = vmatmul.mubr.bf16.gmra.mrb[0].mxu0 %v1232
    %v1351 = vpop.f32.mrb[0].mxu0
    %v1352 = vadd.f32 0.0, %v1351
    %v1353 = vpop.f32.mrb[0].mxu0
    %v1354 = vadd.f32 0.0, %v1353
    %v1355 = vpop.f32.mrb[0].mxu0
    %v1356 = vpop.f32.mrb[0].mxu0
    %1357 = vdwg.mxu0
    %1358 = vmatprep.subr.bf16.mxu0 %v500
    %1359 = vmatpush1.bf16.msra.mxu0 %v499
    %1360 = vmatprep.subr.bf16.mxu0 %v504
    %1361 = vmatpush1.bf16.msra.mxu0 %v503
    %1362 = vmatprep.subr.bf16.mxu0 %v508
    %1363 = vmatpush1.bf16.msra.mxu0 %v507
    %1364 = vmatprep.subr.bf16.mxu0 %v512
    %1365 = vmatpush1.bf16.msra.mxu0 %v511
    %1366 = vmatprep.subr.bf16.mxu0 %v516
    %1367 = vmatpush1.bf16.msra.mxu0 %v515
    %1368 = vmatprep.subr.bf16.mxu0 %v520
    %1369 = vmatpush1.bf16.msra.mxu0 %v519
    %1370 = vmatprep.subr.bf16.mxu0 %v524
    %1371 = vmatpush1.bf16.msra.mxu0 %v523
    %1372 = vmatprep.subr.bf16.mxu0 %v528
    %1373 = vmatpush1.bf16.msra.mxu0 %v527
    %1374 = vmatprep.subr.bf16.mxu0 0
    %1375 = vmatpush1.bf16.msra.mxu0 0
    %1376 = vmatprep.subr.bf16.mxu0 0
    %1377 = vmatpush1.bf16.msra.mxu0 0
    %1378 = vmatprep.subr.bf16.mxu0 0
    %1379 = vmatpush1.bf16.msra.mxu0 0
    %1380 = vmatprep.subr.bf16.mxu0 0
    %1381 = vmatpush1.bf16.msra.mxu0 0
    %1382 = vmatprep.subr.bf16.mxu0 0
    %1383 = vmatpush1.bf16.msra.mxu0 0
    %1384 = vmatprep.subr.bf16.mxu0 0
    %1385 = vmatpush1.bf16.msra.mxu0 0
    %1386 = vmatprep.subr.bf16.mxu0 0
    %1387 = vmatpush1.bf16.msra.mxu0 0
    %1388 = vmatprep.subr.bf16.mxu0 0
    %1389 = vmatpush1.bf16.msra.mxu0 0
    %1390 = vmatprep.mubr.bf16.mxu0 0
    %1391 = vmatmul.mubr.bf16.gmra.mrb[0].mxu0 %v1232
    %v1392 = vpop.f32.mrb[0].mxu0
    %v1393 = vadd.f32 0.0, %v1392
    %v1394 = vpop.f32.mrb[0].mxu0
    %v1395 = vadd.f32 0.0, %v1394
    %v1396 = vpop.f32.mrb[0].mxu0
    %v1397 = vpop.f32.mrb[0].mxu0
    %1398 = vdwg.mxu0
    %v1399 = vadd.f32 %v1270, %v1352
    %v1400 = vadd.f32 %v1272, %v1354
    %v1401 = vadd.f32 %v1311, %v1393
    %v1402 = vadd.f32 %v1313, %v1395
    %v1403 = vmul.f32 %v1399, 0.5
    %v1404 = vtanh.pop %v1403
    %v1405 = vmul.f32 %v1404, 0.5
    %v1406 = vadd.f32 %v1405, 0.5
    %v1407 = vmul.f32 %v1400, 0.5
    %v1408 = vtanh.pop %v1407
    %v1409 = vmul.f32 %v1408, 0.5
    %v1410 = vadd.f32 %v1409, 0.5
    %v1411 = vtanh.pop %v1401
    %v1412 = vmul.f32 %v1402, 0.5
    %v1413 = vtanh.pop %v1412
    %v1414 = vmul.f32 %v1413, 0.5
    %v1415 = vadd.f32 %v1414, 0.5
    %v1416 = vmul.f32 %v1410, %v1229
    %v1417 = vmul.f32 %v1406, %v1411
    %v1418 = vadd.f32 %v1416, %v1417
    %v1419 = vtanh.pop %v1418
    %v1420 = vmul.f32 %v1415, %v1419
    %v1421 = vpack.c.bf16 %v1420, %v1420
    %s1422 = scalar_lea.vmem %s0, 20
    %v1423 = vld [vmem:[%s1422] sm:$0xf]
    %1424 = vmatprep.subr.bf16.mxu0 %v224
    %1425 = vmatpush1.bf16.msra.mxu0 %v223
    %1426 = vmatprep.subr.bf16.mxu0 %v228
    %1427 = vmatpush1.bf16.msra.mxu0 %v227
    %1428 = vmatprep.subr.bf16.mxu0 %v232
    %1429 = vmatpush1.bf16.msra.mxu0 %v231
    %1430 = vmatprep.subr.bf16.mxu0 %v236
    %1431 = vmatpush1.bf16.msra.mxu0 %v235
    %1432 = vmatprep.subr.bf16.mxu0 %v240
    %1433 = vmatpush1.bf16.msra.mxu0 %v239
    %1434 = vmatprep.subr.bf16.mxu0 %v244
    %1435 = vmatpush1.bf16.msra.mxu0 %v243
    %1436 = vmatprep.subr.bf16.mxu0 %v248
    %1437 = vmatpush1.bf16.msra.mxu0 %v247
    %1438 = vmatprep.subr.bf16.mxu0 %v252
    %1439 = vmatpush1.bf16.msra.mxu0 %v251
    %1440 = vmatprep.subr.bf16.mxu0 0
    %1441 = vmatpush1.bf16.msra.mxu0 0
    %1442 = vmatprep.subr.bf16.mxu0 0
    %1443 = vmatpush1.bf16.msra.mxu0 0
    %1444 = vmatprep.subr.bf16.mxu0 0
    %1445 = vmatpush1.bf16.msra.mxu0 0
    %1446 = vmatprep.subr.bf16.mxu0 0
    %1447 = vmatpush1.bf16.msra.mxu0 0
    %1448 = vmatprep.subr.bf16.mxu0 0
    %1449 = vmatpush1.bf16.msra.mxu0 0
    %1450 = vmatprep.subr.bf16.mxu0 0
    %1451 = vmatpush1.bf16.msra.mxu0 0
    %1452 = vmatprep.subr.bf16.mxu0 0
    %1453 = vmatpush1.bf16.msra.mxu0 0
    %1454 = vmatprep.subr.bf16.mxu0 0
    %1455 = vmatpush1.bf16.msra.mxu0 0
    %1456 = vmatprep.mubr.bf16.mxu0 0
    %1457 = vmatmul.mubr.bf16.gmra.mrb[0].mxu0 %v1423
    %v1458 = vpop.f32.mrb[0].mxu0
    %v1459 = vadd.f32 %v110, %v1458
    %v1460 = vpop.f32.mrb[0].mxu0
    %v1461 = vadd.f32 %v114, %v1460
    %v1462 = vpop.f32.mrb[0].mxu0
    %v1463 = vpop.f32.mrb[0].mxu0
    %1464 = vdwg.mxu0
    %1465 = vmatprep.subr.bf16.mxu0 %v226
    %1466 = vmatpush1.bf16.msra.mxu0 %v225
    %1467 = vmatprep.subr.bf16.mxu0 %v230
    %1468 = vmatpush1.bf16.msra.mxu0 %v229
    %1469 = vmatprep.subr.bf16.mxu0 %v234
    %1470 = vmatpush1.bf16.msra.mxu0 %v233
    %1471 = vmatprep.subr.bf16.mxu0 %v238
    %1472 = vmatpush1.bf16.msra.mxu0 %v237
    %1473 = vmatprep.subr.bf16.mxu0 %v242
    %1474 = vmatpush1.bf16.msra.mxu0 %v241
    %1475 = vmatprep.subr.bf16.mxu0 %v246
    %1476 = vmatpush1.bf16.msra.mxu0 %v245
    %1477 = vmatprep.subr.bf16.mxu0 %v250
    %1478 = vmatpush1.bf16.msra.mxu0 %v249
    %1479 = vmatprep.subr.bf16.mxu0 %v254
    %1480 = vmatpush1.bf16.msra.mxu0 %v253
    %1481 = vmatprep.subr.bf16.mxu0 0
    %1482 = vmatpush1.bf16.msra.mxu0 0
    %1483 = vmatprep.subr.bf16.mxu0 0
    %1484 = vmatpush1.bf16.msra.mxu0 0
    %1485 = vmatprep.subr.bf16.mxu0 0
    %1486 = vmatpush1.bf16.msra.mxu0 0
    %1487 = vmatprep.subr.bf16.mxu0 0
    %1488 = vmatpush1.bf16.msra.mxu0 0
    %1489 = vmatprep.subr.bf16.mxu0 0
    %1490 = vmatpush1.bf16.msra.mxu0 0
    %1491 = vmatprep.subr.bf16.mxu0 0
    %1492 = vmatpush1.bf16.msra.mxu0 0
    %1493 = vmatprep.subr.bf16.mxu0 0
    %1494 = vmatpush1.bf16.msra.mxu0 0
    %1495 = vmatprep.subr.bf16.mxu0 0
    %1496 = vmatpush1.bf16.msra.mxu0 0
    %1497 = vmatprep.mubr.bf16.mxu0 0
    %1498 = vmatmul.mubr.bf16.gmra.mrb[0].mxu0 %v1423
    %v1499 = vpop.f32.mrb[0].mxu0
    %v1500 = vadd.f32 %v118, %v1499
    %v1501 = vpop.f32.mrb[0].mxu0
    %v1502 = vadd.f32 %v122, %v1501
    %v1503 = vpop.f32.mrb[0].mxu0
    %v1504 = vpop.f32.mrb[0].mxu0
    %1505 = vdwg.mxu0
    %1506 = vmatprep.subr.bf16.mxu0 %v498
    %1507 = vmatpush1.bf16.msra.mxu0 %v497
    %1508 = vmatprep.subr.bf16.mxu0 %v502
    %1509 = vmatpush1.bf16.msra.mxu0 %v501
    %1510 = vmatprep.subr.bf16.mxu0 %v506
    %1511 = vmatpush1.bf16.msra.mxu0 %v505
    %1512 = vmatprep.subr.bf16.mxu0 %v510
    %1513 = vmatpush1.bf16.msra.mxu0 %v509
    %1514 = vmatprep.subr.bf16.mxu0 %v514
    %1515 = vmatpush1.bf16.msra.mxu0 %v513
    %1516 = vmatprep.subr.bf16.mxu0 %v518
    %1517 = vmatpush1.bf16.msra.mxu0 %v517
    %1518 = vmatprep.subr.bf16.mxu0 %v522
    %1519 = vmatpush1.bf16.msra.mxu0 %v521
    %1520 = vmatprep.subr.bf16.mxu0 %v526
    %1521 = vmatpush1.bf16.msra.mxu0 %v525
    %1522 = vmatprep.subr.bf16.mxu0 0
    %1523 = vmatpush1.bf16.msra.mxu0 0
    %1524 = vmatprep.subr.bf16.mxu0 0
    %1525 = vmatpush1.bf16.msra.mxu0 0
    %1526 = vmatprep.subr.bf16.mxu0 0
    %1527 = vmatpush1.bf16.msra.mxu0 0
    %1528 = vmatprep.subr.bf16.mxu0 0
    %1529 = vmatpush1.bf16.msra.mxu0 0
    %1530 = vmatprep.subr.bf16.mxu0 0
    %1531 = vmatpush1.bf16.msra.mxu0 0
    %1532 = vmatprep.subr.bf16.mxu0 0
    %1533 = vmatpush1.bf16.msra.mxu0 0
    %1534 = vmatprep.subr.bf16.mxu0 0
    %1535 = vmatpush1.bf16.msra.mxu0 0
    %1536 = vmatprep.subr.bf16.mxu0 0
    %1537 = vmatpush1.bf16.msra.mxu0 0
    %1538 = vmatprep.mubr.bf16.mxu0 0
    %1539 = vmatmul.mubr.bf16.gmra.mrb[0].mxu0 %v1421
    %v1540 = vpop.f32.mrb[0].mxu0
    %v1541 = vadd.f32 0.0, %v1540
    %v1542 = vpop.f32.mrb[0].mxu0
    %v1543 = vadd.f32 0.0, %v1542
    %v1544 = vpop.f32.mrb[0].mxu0
    %v1545 = vpop.f32.mrb[0].mxu0
    %1546 = vdwg.mxu0
    %1547 = vmatprep.subr.bf16.mxu0 %v500
    %1548 = vmatpush1.bf16.msra.mxu0 %v499
    %1549 = vmatprep.subr.bf16.mxu0 %v504
    %1550 = vmatpush1.bf16.msra.mxu0 %v503
    %1551 = vmatprep.subr.bf16.mxu0 %v508
    %1552 = vmatpush1.bf16.msra.mxu0 %v507
    %1553 = vmatprep.subr.bf16.mxu0 %v512
    %1554 = vmatpush1.bf16.msra.mxu0 %v511
    %1555 = vmatprep.subr.bf16.mxu0 %v516
    %1556 = vmatpush1.bf16.msra.mxu0 %v515
    %1557 = vmatprep.subr.bf16.mxu0 %v520
    %1558 = vmatpush1.bf16.msra.mxu0 %v519
    %1559 = vmatprep.subr.bf16.mxu0 %v524
    %1560 = vmatpush1.bf16.msra.mxu0 %v523
    %1561 = vmatprep.subr.bf16.mxu0 %v528
    %1562 = vmatpush1.bf16.msra.mxu0 %v527
    %1563 = vmatprep.subr.bf16.mxu0 0
    %1564 = vmatpush1.bf16.msra.mxu0 0
    %1565 = vmatprep.subr.bf16.mxu0 0
    %1566 = vmatpush1.bf16.msra.mxu0 0
    %1567 = vmatprep.subr.bf16.mxu0 0
    %1568 = vmatpush1.bf16.msra.mxu0 0
    %1569 = vmatprep.subr.bf16.mxu0 0
    %1570 = vmatpush1.bf16.msra.mxu0 0
    %1571 = vmatprep.subr.bf16.mxu0 0
    %1572 = vmatpush1.bf16.msra.mxu0 0
    %1573 = vmatprep.subr.bf16.mxu0 0
    %1574 = vmatpush1.bf16.msra.mxu0 0
    %1575 = vmatprep.subr.bf16.mxu0 0
    %1576 = vmatpush1.bf16.msra.mxu0 0
    %1577 = vmatprep.subr.bf16.mxu0 0
    %1578 = vmatpush1.bf16.msra.mxu0 0
    %1579 = vmatprep.mubr.bf16.mxu0 0
    %1580 = vmatmul.mubr.bf16.gmra.mrb[0].mxu0 %v1421
    %v1581 = vpop.f32.mrb[0].mxu0
    %v1582 = vadd.f32 0.0, %v1581
    %v1583 = vpop.f32.mrb[0].mxu0
    %v1584 = vadd.f32 0.0, %v1583
    %v1585 = vpop.f32.mrb[0].mxu0
    %v1586 = vpop.f32.mrb[0].mxu0
    %1587 = vdwg.mxu0
    %v1588 = vadd.f32 %v1459, %v1541
    %v1589 = vadd.f32 %v1461, %v1543
    %v1590 = vadd.f32 %v1500, %v1582
    %v1591 = vadd.f32 %v1502, %v1584
    %v1592 = vmul.f32 %v1588, 0.5
    %v1593 = vtanh.pop %v1592
    %v1594 = vmul.f32 %v1593, 0.5
    %v1595 = vadd.f32 %v1594, 0.5
    %v1596 = vmul.f32 %v1589, 0.5
    %v1597 = vtanh.pop %v1596
    %v1598 = vmul.f32 %v1597, 0.5
    %v1599 = vadd.f32 %v1598, 0.5
    %v1600 = vtanh.pop %v1590
    %v1601 = vmul.f32 %v1591, 0.5
    %v1602 = vtanh.pop %v1601
    %v1603 = vmul.f32 %v1602, 0.5
    %v1604 = vadd.f32 %v1603, 0.5
    %v1605 = vmul.f32 %v1599, %v1418
    %v1606 = vmul.f32 %v1595, %v1600
    %v1607 = vadd.f32 %v1605, %v1606
    %v1608 = vtanh.pop %v1607
    %v1609 = vmul.f32 %v1604, %v1608
    %v1610 = vpack.c.bf16 %v1609, %v1609
    %s1611 = scalar_lea.vmem %s0, 24
    %v1612 = vld [vmem:[%s1611] sm:$0xf]
    %1613 = vmatprep.subr.bf16.mxu0 %v224
    %1614 = vmatpush1.bf16.msra.mxu0 %v223
    %1615 = vmatprep.subr.bf16.mxu0 %v228
    %1616 = vmatpush1.bf16.msra.mxu0 %v227
    %1617 = vmatprep.subr.bf16.mxu0 %v232
    %1618 = vmatpush1.bf16.msra.mxu0 %v231
    %1619 = vmatprep.subr.bf16.mxu0 %v236
    %1620 = vmatpush1.bf16.msra.mxu0 %v235
    %1621 = vmatprep.subr.bf16.mxu0 %v240
    %1622 = vmatpush1.bf16.msra.mxu0 %v239
    %1623 = vmatprep.subr.bf16.mxu0 %v244
    %1624 = vmatpush1.bf16.msra.mxu0 %v243
    %1625 = vmatprep.subr.bf16.mxu0 %v248
    %1626 = vmatpush1.bf16.msra.mxu0 %v247
    %1627 = vmatprep.subr.bf16.mxu0 %v252
    %1628 = vmatpush1.bf16.msra.mxu0 %v251
    %1629 = vmatprep.subr.bf16.mxu0 0
    %1630 = vmatpush1.bf16.msra.mxu0 0
    %1631 = vmatprep.subr.bf16.mxu0 0
    %1632 = vmatpush1.bf16.msra.mxu0 0
    %1633 = vmatprep.subr.bf16.mxu0 0
    %1634 = vmatpush1.bf16.msra.mxu0 0
    %1635 = vmatprep.subr.bf16.mxu0 0
    %1636 = vmatpush1.bf16.msra.mxu0 0
    %1637 = vmatprep.subr.bf16.mxu0 0
    %1638 = vmatpush1.bf16.msra.mxu0 0
    %1639 = vmatprep.subr.bf16.mxu0 0
    %1640 = vmatpush1.bf16.msra.mxu0 0
    %1641 = vmatprep.subr.bf16.mxu0 0
    %1642 = vmatpush1.bf16.msra.mxu0 0
    %1643 = vmatprep.subr.bf16.mxu0 0
    %1644 = vmatpush1.bf16.msra.mxu0 0
    %1645 = vmatprep.mubr.bf16.mxu0 0
    %1646 = vmatmul.mubr.bf16.gmra.mrb[0].mxu0 %v1612
    %v1647 = vpop.f32.mrb[0].mxu0
    %v1648 = vadd.f32 %v110, %v1647
    %v1649 = vpop.f32.mrb[0].mxu0
    %v1650 = vadd.f32 %v114, %v1649
    %v1651 = vpop.f32.mrb[0].mxu0
    %v1652 = vpop.f32.mrb[0].mxu0
    %1653 = vdwg.mxu0
    %1654 = vmatprep.subr.bf16.mxu0 %v226
    %1655 = vmatpush1.bf16.msra.mxu0 %v225
    %1656 = vmatprep.subr.bf16.mxu0 %v230
    %1657 = vmatpush1.bf16.msra.mxu0 %v229
    %1658 = vmatprep.subr.bf16.mxu0 %v234
    %1659 = vmatpush1.bf16.msra.mxu0 %v233
    %1660 = vmatprep.subr.bf16.mxu0 %v238
    %1661 = vmatpush1.bf16.msra.mxu0 %v237
    %1662 = vmatprep.subr.bf16.mxu0 %v242
    %1663 = vmatpush1.bf16.msra.mxu0 %v241
    %1664 = vmatprep.subr.bf16.mxu0 %v246
    %1665 = vmatpush1.bf16.msra.mxu0 %v245
    %1666 = vmatprep.subr.bf16.mxu0 %v250
    %1667 = vmatpush1.bf16.msra.mxu0 %v249
    %1668 = vmatprep.subr.bf16.mxu0 %v254
    %1669 = vmatpush1.bf16.msra.mxu0 %v253
    %1670 = vmatprep.subr.bf16.mxu0 0
    %1671 = vmatpush1.bf16.msra.mxu0 0
    %1672 = vmatprep.subr.bf16.mxu0 0
    %1673 = vmatpush1.bf16.msra.mxu0 0
    %1674 = vmatprep.subr.bf16.mxu0 0
    %1675 = vmatpush1.bf16.msra.mxu0 0
    %1676 = vmatprep.subr.bf16.mxu0 0
    %1677 = vmatpush1.bf16.msra.mxu0 0
    %1678 = vmatprep.subr.bf16.mxu0 0
    %1679 = vmatpush1.bf16.msra.mxu0 0
    %1680 = vmatprep.subr.bf16.mxu0 0
    %1681 = vmatpush1.bf16.msra.mxu0 0
    %1682 = vmatprep.subr.bf16.mxu0 0
    %1683 = vmatpush1.bf16.msra.mxu0 0
    %1684 = vmatprep.subr.bf16.mxu0 0
    %1685 = vmatpush1.bf16.msra.mxu0 0
    %1686 = vmatprep.mubr.bf16.mxu0 0
    %1687 = vmatmul.mubr.bf16.gmra.mrb[0].mxu0 %v1612
    %v1688 = vpop.f32.mrb[0].mxu0
    %v1689 = vadd.f32 %v118, %v1688
    %v1690 = vpop.f32.mrb[0].mxu0
    %v1691 = vadd.f32 %v122, %v1690
    %v1692 = vpop.f32.mrb[0].mxu0
    %v1693 = vpop.f32.mrb[0].mxu0
    %1694 = vdwg.mxu0
    %1695 = vmatprep.subr.bf16.mxu0 %v498
    %1696 = vmatpush1.bf16.msra.mxu0 %v497
    %1697 = vmatprep.subr.bf16.mxu0 %v502
    %1698 = vmatpush1.bf16.msra.mxu0 %v501
    %1699 = vmatprep.subr.bf16.mxu0 %v506
    %1700 = vmatpush1.bf16.msra.mxu0 %v505
    %1701 = vmatprep.subr.bf16.mxu0 %v510
    %1702 = vmatpush1.bf16.msra.mxu0 %v509
    %1703 = vmatprep.subr.bf16.mxu0 %v514
    %1704 = vmatpush1.bf16.msra.mxu0 %v513
    %1705 = vmatprep.subr.bf16.mxu0 %v518
    %1706 = vmatpush1.bf16.msra.mxu0 %v517
    %1707 = vmatprep.subr.bf16.mxu0 %v522
    %1708 = vmatpush1.bf16.msra.mxu0 %v521
    %1709 = vmatprep.subr.bf16.mxu0 %v526
    %1710 = vmatpush1.bf16.msra.mxu0 %v525
    %1711 = vmatprep.subr.bf16.mxu0 0
    %1712 = vmatpush1.bf16.msra.mxu0 0
    %1713 = vmatprep.subr.bf16.mxu0 0
    %1714 = vmatpush1.bf16.msra.mxu0 0
    %1715 = vmatprep.subr.bf16.mxu0 0
    %1716 = vmatpush1.bf16.msra.mxu0 0
    %1717 = vmatprep.subr.bf16.mxu0 0
    %1718 = vmatpush1.bf16.msra.mxu0 0
    %1719 = vmatprep.subr.bf16.mxu0 0
    %1720 = vmatpush1.bf16.msra.mxu0 0
    %1721 = vmatprep.subr.bf16.mxu0 0
    %1722 = vmatpush1.bf16.msra.mxu0 0
    %1723 = vmatprep.subr.bf16.mxu0 0
    %1724 = vmatpush1.bf16.msra.mxu0 0
    %1725 = vmatprep.subr.bf16.mxu0 0
    %1726 = vmatpush1.bf16.msra.mxu0 0
    %1727 = vmatprep.mubr.bf16.mxu0 0
    %1728 = vmatmul.mubr.bf16.gmra.mrb[0].mxu0 %v1610
    %v1729 = vpop.f32.mrb[0].mxu0
    %v1730 = vadd.f32 0.0, %v1729
    %v1731 = vpop.f32.mrb[0].mxu0
    %v1732 = vadd.f32 0.0, %v1731
    %v1733 = vpop.f32.mrb[0].mxu0
    %v1734 = vpop.f32.mrb[0].mxu0
    %1735 = vdwg.mxu0
    %1736 = vmatprep.subr.bf16.mxu0 %v500
    %1737 = vmatpush1.bf16.msra.mxu0 %v499
    %1738 = vmatprep.subr.bf16.mxu0 %v504
    %1739 = vmatpush1.bf16.msra.mxu0 %v503
    %1740 = vmatprep.subr.bf16.mxu0 %v508
    %1741 = vmatpush1.bf16.msra.mxu0 %v507
    %1742 = vmatprep.subr.bf16.mxu0 %v512
    %1743 = vmatpush1.bf16.msra.mxu0 %v511
    %1744 = vmatprep.subr.bf16.mxu0 %v516
    %1745 = vmatpush1.bf16.msra.mxu0 %v515
    %1746 = vmatprep.subr.bf16.mxu0 %v520
    %1747 = vmatpush1.bf16.msra.mxu0 %v519
    %1748 = vmatprep.subr.bf16.mxu0 %v524
    %1749 = vmatpush1.bf16.msra.mxu0 %v523
    %1750 = vmatprep.subr.bf16.mxu0 %v528
    %1751 = vmatpush1.bf16.msra.mxu0 %v527
    %1752 = vmatprep.subr.bf16.mxu0 0
    %1753 = vmatpush1.bf16.msra.mxu0 0
    %1754 = vmatprep.subr.bf16.mxu0 0
    %1755 = vmatpush1.bf16.msra.mxu0 0
    %1756 = vmatprep.subr.bf16.mxu0 0
    %1757 = vmatpush1.bf16.msra.mxu0 0
    %1758 = vmatprep.subr.bf16.mxu0 0
    %1759 = vmatpush1.bf16.msra.mxu0 0
    %1760 = vmatprep.subr.bf16.mxu0 0
    %1761 = vmatpush1.bf16.msra.mxu0 0
    %1762 = vmatprep.subr.bf16.mxu0 0
    %1763 = vmatpush1.bf16.msra.mxu0 0
    %1764 = vmatprep.subr.bf16.mxu0 0
    %1765 = vmatpush1.bf16.msra.mxu0 0
    %1766 = vmatprep.subr.bf16.mxu0 0
    %1767 = vmatpush1.bf16.msra.mxu0 0
    %1768 = vmatprep.mubr.bf16.mxu0 0
    %1769 = vmatmul.mubr.bf16.gmra.mrb[0].mxu0 %v1610
    %v1770 = vpop.f32.mrb[0].mxu0
    %v1771 = vadd.f32 0.0, %v1770
    %v1772 = vpop.f32.mrb[0].mxu0
    %v1773 = vadd.f32 0.0, %v1772
    %v1774 = vpop.f32.mrb[0].mxu0
    %v1775 = vpop.f32.mrb[0].mxu0
    %1776 = vdwg.mxu0
    %v1777 = vadd.f32 %v1648, %v1730
    %v1778 = vadd.f32 %v1650, %v1732
    %v1779 = vadd.f32 %v1689, %v1771
    %v1780 = vadd.f32 %v1691, %v1773
    %v1781 = vmul.f32 %v1777, 0.5
    %v1782 = vtanh.pop %v1781
    %v1783 = vmul.f32 %v1782, 0.5
    %v1784 = vadd.f32 %v1783, 0.5
    %v1785 = vmul.f32 %v1778, 0.5
    %v1786 = vtanh.pop %v1785
    %v1787 = vmul.f32 %v1786, 0.5
    %v1788 = vadd.f32 %v1787, 0.5
    %v1789 = vtanh.pop %v1779
    %v1790 = vmul.f32 %v1780, 0.5
    %v1791 = vtanh.pop %v1790
    %v1792 = vmul.f32 %v1791, 0.5
    %v1793 = vadd.f32 %v1792, 0.5
    %v1794 = vmul.f32 %v1788, %v1607
    %v1795 = vmul.f32 %v1784, %v1789
    %v1796 = vadd.f32 %v1794, %v1795
    %v1797 = vtanh.pop %v1796
    %v1798 = vmul.f32 %v1793, %v1797
    %v1799 = vpack.c.bf16 %v1798, %v1798
    %s1800 = scalar_lea.vmem %s0, 28
    %v1801 = vld [vmem:[%s1800] sm:$0xf]
    %1802 = vmatprep.subr.bf16.mxu0 %v224
    %1803 = vmatpush1.bf16.msra.mxu0 %v223
    %1804 = vmatprep.subr.bf16.mxu0 %v228
    %1805 = vmatpush1.bf16.msra.mxu0 %v227
    %1806 = vmatprep.subr.bf16.mxu0 %v232
    %1807 = vmatpush1.bf16.msra.mxu0 %v231
    %1808 = vmatprep.subr.bf16.mxu0 %v236
    %1809 = vmatpush1.bf16.msra.mxu0 %v235
    %1810 = vmatprep.subr.bf16.mxu0 %v240
    %1811 = vmatpush1.bf16.msra.mxu0 %v239
    %1812 = vmatprep.subr.bf16.mxu0 %v244
    %1813 = vmatpush1.bf16.msra.mxu0 %v243
    %1814 = vmatprep.subr.bf16.mxu0 %v248
    %1815 = vmatpush1.bf16.msra.mxu0 %v247
    %1816 = vmatprep.subr.bf16.mxu0 %v252
    %1817 = vmatpush1.bf16.msra.mxu0 %v251
    %1818 = vmatprep.subr.bf16.mxu0 0
    %1819 = vmatpush1.bf16.msra.mxu0 0
    %1820 = vmatprep.subr.bf16.mxu0 0
    %1821 = vmatpush1.bf16.msra.mxu0 0
    %1822 = vmatprep.subr.bf16.mxu0 0
    %1823 = vmatpush1.bf16.msra.mxu0 0
    %1824 = vmatprep.subr.bf16.mxu0 0
    %1825 = vmatpush1.bf16.msra.mxu0 0
    %1826 = vmatprep.subr.bf16.mxu0 0
    %1827 = vmatpush1.bf16.msra.mxu0 0
    %1828 = vmatprep.subr.bf16.mxu0 0
    %1829 = vmatpush1.bf16.msra.mxu0 0
    %1830 = vmatprep.subr.bf16.mxu0 0
    %1831 = vmatpush1.bf16.msra.mxu0 0
    %1832 = vmatprep.subr.bf16.mxu0 0
    %1833 = vmatpush1.bf16.msra.mxu0 0
    %1834 = vmatprep.mubr.bf16.mxu0 0
    %1835 = vmatmul.mubr.bf16.gmra.mrb[0].mxu0 %v1801
    %v1836 = vpop.f32.mrb[0].mxu0
    %v1837 = vadd.f32 %v110, %v1836
    %v1838 = vpop.f32.mrb[0].mxu0
    %v1839 = vadd.f32 %v114, %v1838
    %v1840 = vpop.f32.mrb[0].mxu0
    %v1841 = vpop.f32.mrb[0].mxu0
    %1842 = vdwg.mxu0
    %1843 = vmatprep.subr.bf16.mxu0 %v226
    %1844 = vmatpush1.bf16.msra.mxu0 %v225
    %1845 = vmatprep.subr.bf16.mxu0 %v230
    %1846 = vmatpush1.bf16.msra.mxu0 %v229
    %1847 = vmatprep.subr.bf16.mxu0 %v234
    %1848 = vmatpush1.bf16.msra.mxu0 %v233
    %1849 = vmatprep.subr.bf16.mxu0 %v238
    %1850 = vmatpush1.bf16.msra.mxu0 %v237
    %1851 = vmatprep.subr.bf16.mxu0 %v242
    %1852 = vmatpush1.bf16.msra.mxu0 %v241
    %1853 = vmatprep.subr.bf16.mxu0 %v246
    %1854 = vmatpush1.bf16.msra.mxu0 %v245
    %1855 = vmatprep.subr.bf16.mxu0 %v250
    %1856 = vmatpush1.bf16.msra.mxu0 %v249
    %1857 = vmatprep.subr.bf16.mxu0 %v254
    %1858 = vmatpush1.bf16.msra.mxu0 %v253
    %1859 = vmatprep.subr.bf16.mxu0 0
    %1860 = vmatpush1.bf16.msra.mxu0 0
    %1861 = vmatprep.subr.bf16.mxu0 0
    %1862 = vmatpush1.bf16.msra.mxu0 0
    %1863 = vmatprep.subr.bf16.mxu0 0
    %1864 = vmatpush1.bf16.msra.mxu0 0
    %1865 = vmatprep.subr.bf16.mxu0 0
    %1866 = vmatpush1.bf16.msra.mxu0 0
    %1867 = vmatprep.subr.bf16.mxu0 0
    %1868 = vmatpush1.bf16.msra.mxu0 0
    %1869 = vmatprep.subr.bf16.mxu0 0
    %1870 = vmatpush1.bf16.msra.mxu0 0
    %1871 = vmatprep.subr.bf16.mxu0 0
    %1872 = vmatpush1.bf16.msra.mxu0 0
    %1873 = vmatprep.subr.bf16.mxu0 0
    %1874 = vmatpush1.bf16.msra.mxu0 0
    %1875 = vmatprep.mubr.bf16.mxu0 0
    %1876 = vmatmul.mubr.bf16.gmra.mrb[0].mxu0 %v1801
    %v1877 = vpop.f32.mrb[0].mxu0
    %v1878 = vadd.f32 %v118, %v1877
    %v1879 = vpop.f32.mrb[0].mxu0
    %v1880 = vadd.f32 %v122, %v1879
    %v1881 = vpop.f32.mrb[0].mxu0
    %v1882 = vpop.f32.mrb[0].mxu0
    %1883 = vdwg.mxu0
    %1884 = vmatprep.subr.bf16.mxu0 %v498
    %1885 = vmatpush1.bf16.msra.mxu0 %v497
    %1886 = vmatprep.subr.bf16.mxu0 %v502
    %1887 = vmatpush1.bf16.msra.mxu0 %v501
    %1888 = vmatprep.subr.bf16.mxu0 %v506
    %1889 = vmatpush1.bf16.msra.mxu0 %v505
    %1890 = vmatprep.subr.bf16.mxu0 %v510
    %1891 = vmatpush1.bf16.msra.mxu0 %v509
    %1892 = vmatprep.subr.bf16.mxu0 %v514
    %1893 = vmatpush1.bf16.msra.mxu0 %v513
    %1894 = vmatprep.subr.bf16.mxu0 %v518
    %1895 = vmatpush1.bf16.msra.mxu0 %v517
    %1896 = vmatprep.subr.bf16.mxu0 %v522
    %1897 = vmatpush1.bf16.msra.mxu0 %v521
    %1898 = vmatprep.subr.bf16.mxu0 %v526
    %1899 = vmatpush1.bf16.msra.mxu0 %v525
    %1900 = vmatprep.subr.bf16.mxu0 0
    %1901 = vmatpush1.bf16.msra.mxu0 0
    %1902 = vmatprep.subr.bf16.mxu0 0
    %1903 = vmatpush1.bf16.msra.mxu0 0
    %1904 = vmatprep.subr.bf16.mxu0 0
    %1905 = vmatpush1.bf16.msra.mxu0 0
    %1906 = vmatprep.subr.bf16.mxu0 0
    %1907 = vmatpush1.bf16.msra.mxu0 0
    %1908 = vmatprep.subr.bf16.mxu0 0
    %1909 = vmatpush1.bf16.msra.mxu0 0
    %1910 = vmatprep.subr.bf16.mxu0 0
    %1911 = vmatpush1.bf16.msra.mxu0 0
    %1912 = vmatprep.subr.bf16.mxu0 0
    %1913 = vmatpush1.bf16.msra.mxu0 0
    %1914 = vmatprep.subr.bf16.mxu0 0
    %1915 = vmatpush1.bf16.msra.mxu0 0
    %1916 = vmatprep.mubr.bf16.mxu0 0
    %1917 = vmatmul.mubr.bf16.gmra.mrb[0].mxu0 %v1799
    %v1918 = vpop.f32.mrb[0].mxu0
    %v1919 = vadd.f32 0.0, %v1918
    %v1920 = vpop.f32.mrb[0].mxu0
    %v1921 = vadd.f32 0.0, %v1920
    %v1922 = vpop.f32.mrb[0].mxu0
    %v1923 = vpop.f32.mrb[0].mxu0
    %1924 = vdwg.mxu0
    %1925 = vmatprep.subr.bf16.mxu0 %v500
    %1926 = vmatpush1.bf16.msra.mxu0 %v499
    %1927 = vmatprep.subr.bf16.mxu0 %v504
    %1928 = vmatpush1.bf16.msra.mxu0 %v503
    %1929 = vmatprep.subr.bf16.mxu0 %v508
    %1930 = vmatpush1.bf16.msra.mxu0 %v507
    %1931 = vmatprep.subr.bf16.mxu0 %v512
    %1932 = vmatpush1.bf16.msra.mxu0 %v511
    %1933 = vmatprep.subr.bf16.mxu0 %v516
    %1934 = vmatpush1.bf16.msra.mxu0 %v515
    %1935 = vmatprep.subr.bf16.mxu0 %v520
    %1936 = vmatpush1.bf16.msra.mxu0 %v519
    %1937 = vmatprep.subr.bf16.mxu0 %v524
    %1938 = vmatpush1.bf16.msra.mxu0 %v523
    %1939 = vmatprep.subr.bf16.mxu0 %v528
    %1940 = vmatpush1.bf16.msra.mxu0 %v527
    %1941 = vmatprep.subr.bf16.mxu0 0
    %1942 = vmatpush1.bf16.msra.mxu0 0
    %1943 = vmatprep.subr.bf16.mxu0 0
    %1944 = vmatpush1.bf16.msra.mxu0 0
    %1945 = vmatprep.subr.bf16.mxu0 0
    %1946 = vmatpush1.bf16.msra.mxu0 0
    %1947 = vmatprep.subr.bf16.mxu0 0
    %1948 = vmatpush1.bf16.msra.mxu0 0
    %1949 = vmatprep.subr.bf16.mxu0 0
    %1950 = vmatpush1.bf16.msra.mxu0 0
    %1951 = vmatprep.subr.bf16.mxu0 0
    %1952 = vmatpush1.bf16.msra.mxu0 0
    %1953 = vmatprep.subr.bf16.mxu0 0
    %1954 = vmatpush1.bf16.msra.mxu0 0
    %1955 = vmatprep.subr.bf16.mxu0 0
    %1956 = vmatpush1.bf16.msra.mxu0 0
    %1957 = vmatprep.mubr.bf16.mxu0 0
    %1958 = vmatmul.mubr.bf16.gmra.mrb[0].mxu0 %v1799
    %v1959 = vpop.f32.mrb[0].mxu0
    %v1960 = vadd.f32 0.0, %v1959
    %v1961 = vpop.f32.mrb[0].mxu0
    %v1962 = vadd.f32 0.0, %v1961
    %v1963 = vpop.f32.mrb[0].mxu0
    %v1964 = vpop.f32.mrb[0].mxu0
    %1965 = vdwg.mxu0
    %v1966 = vadd.f32 %v1837, %v1919
    %v1967 = vadd.f32 %v1839, %v1921
    %v1968 = vadd.f32 %v1878, %v1960
    %v1969 = vadd.f32 %v1880, %v1962
    %v1970 = vmul.f32 %v1966, 0.5
    %v1971 = vtanh.pop %v1970
    %v1972 = vmul.f32 %v1971, 0.5
    %v1973 = vadd.f32 %v1972, 0.5
    %v1974 = vmul.f32 %v1967, 0.5
    %v1975 = vtanh.pop %v1974
    %v1976 = vmul.f32 %v1975, 0.5
    %v1977 = vadd.f32 %v1976, 0.5
    %v1978 = vtanh.pop %v1968
    %v1979 = vmul.f32 %v1969, 0.5
    %v1980 = vtanh.pop %v1979
    %v1981 = vmul.f32 %v1980, 0.5
    %v1982 = vadd.f32 %v1981, 0.5
    %v1983 = vmul.f32 %v1977, %v1796
    %v1984 = vmul.f32 %v1973, %v1978
    %v1985 = vadd.f32 %v1983, %v1984
    %v1986 = vtanh.pop %v1985
    %v1987 = vmul.f32 %v1982, %v1986
    %v1988 = vpack.c.bf16 %v1987, %v1987
    %v1989 = vld [vmem:[%s4] sm:$0xf]
    %v1990 = vld [vmem:[%s4 + $0x4] sm:$0xf]
    %v1991 = vld [vmem:[%s4 + $0x8] sm:$0xf]
    %v1992 = vld [vmem:[%s4 + $0xc] sm:$0xf]
    %v1993 = vld [vmem:[%s4 + $0x10] sm:$0xf]
    %v1994 = vld [vmem:[%s4 + $0x14] sm:$0xf]
    %v1995 = vld [vmem:[%s4 + $0x18] sm:$0xf]
    %v1996 = vld [vmem:[%s4 + $0x1c] sm:$0xf]
    %v1997 = vld [vmem:[%s4 + $0x20] sm:$0xf]
    %v1998 = vld [vmem:[%s4 + $0x24] sm:$0xf]
    %v1999 = vld [vmem:[%s4 + $0x28] sm:$0xf]
    %v2000 = vld [vmem:[%s4 + $0x2c] sm:$0xf]
    %v2001 = vld [vmem:[%s4 + $0x30] sm:$0xf]
    %v2002 = vld [vmem:[%s4 + $0x34] sm:$0xf]
    %v2003 = vld [vmem:[%s4 + $0x38] sm:$0xf]
    %v2004 = vld [vmem:[%s4 + $0x3c] sm:$0xf]
    %v2005 = vld [vmem:[%s5] sm:$0x1]
    %v2007 = vlaneseq
    %v2008 = vshrl.u32 %v2007, 7
    %v2009 = vsub.s32 0, %v2008
    %v2010 = vrot.slane %v2005, %v2009
    %v2028 = vunpack.c.l.b16 %v1989
    %v2029 = vunpack.c.l.b16 %v1990
    %v2030 = vunpack.c.l.b16 %v1991
    %v2031 = vunpack.c.l.b16 %v1992
    %v2032 = vunpack.c.l.b16 %v1993
    %v2033 = vunpack.c.l.b16 %v1994
    %v2034 = vunpack.c.l.b16 %v1995
    %v2035 = vunpack.c.l.b16 %v1996
    %v2036 = vunpack.c.l.b16 %v1997
    %v2037 = vunpack.c.l.b16 %v1998
    %v2038 = vunpack.c.l.b16 %v1999
    %v2039 = vunpack.c.l.b16 %v2000
    %v2040 = vunpack.c.l.b16 %v2001
    %v2041 = vunpack.c.l.b16 %v2002
    %v2042 = vunpack.c.l.b16 %v2003
    %v2043 = vunpack.c.l.b16 %v2004
    %v2044 = vpack.c.b16 %v2029, %v2028
    %v2045 = vpack.c.b16 %v2031, %v2030
    %v2046 = vpack.c.b16 %v2033, %v2032
    %v2047 = vpack.c.b16 %v2035, %v2034
    %v2048 = vpack.c.b16 %v2037, %v2036
    %v2049 = vpack.c.b16 %v2039, %v2038
    %v2050 = vpack.c.b16 %v2041, %v2040
    %v2051 = vpack.c.b16 %v2043, %v2042
    %2060 = vmatprep.subr.bf16.mxu0 0
    %2061 = vmatpush1.bf16.msra.mxu0 %v2044
    %2062 = vmatprep.subr.bf16.mxu0 0
    %2063 = vmatpush1.bf16.msra.mxu0 %v2045
    %2064 = vmatprep.subr.bf16.mxu0 0
    %2065 = vmatpush1.bf16.msra.mxu0 %v2046
    %2066 = vmatprep.subr.bf16.mxu0 0
    %2067 = vmatpush1.bf16.msra.mxu0 %v2047
    %2068 = vmatprep.subr.bf16.mxu0 0
    %2069 = vmatpush1.bf16.msra.mxu0 %v2048
    %2070 = vmatprep.subr.bf16.mxu0 0
    %2071 = vmatpush1.bf16.msra.mxu0 %v2049
    %2072 = vmatprep.subr.bf16.mxu0 0
    %2073 = vmatpush1.bf16.msra.mxu0 %v2050
    %2074 = vmatprep.subr.bf16.mxu0 0
    %2075 = vmatpush1.bf16.msra.mxu0 %v2051
    %2076 = vmatprep.subr.bf16.mxu0 0
    %2077 = vmatpush1.bf16.msra.mxu0 0
    %2078 = vmatprep.subr.bf16.mxu0 0
    %2079 = vmatpush1.bf16.msra.mxu0 0
    %2080 = vmatprep.subr.bf16.mxu0 0
    %2081 = vmatpush1.bf16.msra.mxu0 0
    %2082 = vmatprep.subr.bf16.mxu0 0
    %2083 = vmatpush1.bf16.msra.mxu0 0
    %2084 = vmatprep.subr.bf16.mxu0 0
    %2085 = vmatpush1.bf16.msra.mxu0 0
    %2086 = vmatprep.subr.bf16.mxu0 0
    %2087 = vmatpush1.bf16.msra.mxu0 0
    %2088 = vmatprep.subr.bf16.mxu0 0
    %2089 = vmatpush1.bf16.msra.mxu0 0
    %2090 = vmatprep.subr.bf16.mxu0 0
    %2091 = vmatpush1.bf16.msra.mxu0 0
    %2092 = vmatprep.mubr.bf16.mxu0 0
    %2093 = vmatmul.mubr.bf16.gmra.mrb[0].mxu0 %v1988
    %v2094 = vpop.f32.mrb[0].mxu0
    %v2095 = vadd.f32 %v2010, %v2094
    %v2096 = vpop.f32.mrb[0].mxu0
    %v2097 = vpop.f32.mrb[0].mxu0
    %v2098 = vpop.f32.mrb[0].mxu0
    %2099 = vdwg.mxu0
    %v2100 = vmul.f32 %v2095, 0.5
    %v2101 = vtanh.pop %v2100
    %v2102 = vmul.f32 %v2101, 0.5
    %v2103 = vadd.f32 %v2102, 0.5
    %v2104 = vmul.f32 %v2095, %v2103
    %v2105 = vpack.c.bf16 %v2104, %v2104
    %v2106 = vld [vmem:[#allocation7] sm:$0xf]
    %v2107 = vld [vmem:[#allocation7 + $0x4] sm:$0xf]
    %v2108 = vld [vmem:[#allocation7 + $0x8] sm:$0xf]
    %v2109 = vld [vmem:[#allocation7 + $0xc] sm:$0xf]
    %v2110 = vld [vmem:[#allocation7 + $0x10] sm:$0xf]
    %v2111 = vld [vmem:[#allocation7 + $0x14] sm:$0xf]
    %v2112 = vld [vmem:[#allocation7 + $0x18] sm:$0xf]
    %v2113 = vld [vmem:[#allocation7 + $0x1c] sm:$0xf]
    %v2114 = vld [vmem:[#allocation7 + $0x20] sm:$0xf]
    %v2115 = vld [vmem:[#allocation7 + $0x24] sm:$0xf]
    %v2116 = vld [vmem:[#allocation7 + $0x28] sm:$0xf]
    %v2117 = vld [vmem:[#allocation7 + $0x2c] sm:$0xf]
    %v2118 = vld [vmem:[#allocation7 + $0x30] sm:$0xf]
    %v2119 = vld [vmem:[#allocation7 + $0x34] sm:$0xf]
    %v2120 = vld [vmem:[#allocation7 + $0x38] sm:$0xf]
    %v2121 = vld [vmem:[#allocation7 + $0x3c] sm:$0xf]
    %v2122 = vld [vmem:[%s7] sm:$0x1]
    %v2124 = vlaneseq
    %v2125 = vshrl.u32 %v2124, 7
    %v2126 = vsub.s32 0, %v2125
    %v2127 = vrot.slane %v2122, %v2126
    %v2145 = vunpack.c.l.b16 %v2106
    %v2146 = vunpack.c.l.b16 %v2107
    %v2147 = vunpack.c.l.b16 %v2108
    %v2148 = vunpack.c.l.b16 %v2109
    %v2149 = vunpack.c.l.b16 %v2110
    %v2150 = vunpack.c.l.b16 %v2111
    %v2151 = vunpack.c.l.b16 %v2112
    %v2152 = vunpack.c.l.b16 %v2113
    %v2153 = vunpack.c.l.b16 %v2114
    %v2154 = vunpack.c.l.b16 %v2115
    %v2155 = vunpack.c.l.b16 %v2116
    %v2156 = vunpack.c.l.b16 %v2117
    %v2157 = vunpack.c.l.b16 %v2118
    %v2158 = vunpack.c.l.b16 %v2119
    %v2159 = vunpack.c.l.b16 %v2120
    %v2160 = vunpack.c.l.b16 %v2121
    %v2161 = vpack.c.b16 %v2146, %v2145
    %v2162 = vpack.c.b16 %v2148, %v2147
    %v2163 = vpack.c.b16 %v2150, %v2149
    %v2164 = vpack.c.b16 %v2152, %v2151
    %v2165 = vpack.c.b16 %v2154, %v2153
    %v2166 = vpack.c.b16 %v2156, %v2155
    %v2167 = vpack.c.b16 %v2158, %v2157
    %v2168 = vpack.c.b16 %v2160, %v2159
    %2177 = vmatprep.subr.bf16.mxu0 0
    %2178 = vmatpush1.bf16.msra.mxu0 %v2161
    %2179 = vmatprep.subr.bf16.mxu0 0
    %2180 = vmatpush1.bf16.msra.mxu0 %v2162
    %2181 = vmatprep.subr.bf16.mxu0 0
    %2182 = vmatpush1.bf16.msra.mxu0 %v2163
    %2183 = vmatprep.subr.bf16.mxu0 0
    %2184 = vmatpush1.bf16.msra.mxu0 %v2164
    %2185 = vmatprep.subr.bf16.mxu0 0
    %2186 = vmatpush1.bf16.msra.mxu0 %v2165
    %2187 = vmatprep.subr.bf16.mxu0 0
    %2188 = vmatpush1.bf16.msra.mxu0 %v2166
    %2189 = vmatprep.subr.bf16.mxu0 0
    %2190 = vmatpush1.bf16.msra.mxu0 %v2167
    %2191 = vmatprep.subr.bf16.mxu0 0
    %2192 = vmatpush1.bf16.msra.mxu0 %v2168
    %2193 = vmatprep.subr.bf16.mxu0 0
    %2194 = vmatpush1.bf16.msra.mxu0 0
    %2195 = vmatprep.subr.bf16.mxu0 0
    %2196 = vmatpush1.bf16.msra.mxu0 0
    %2197 = vmatprep.subr.bf16.mxu0 0
    %2198 = vmatpush1.bf16.msra.mxu0 0
    %2199 = vmatprep.subr.bf16.mxu0 0
    %2200 = vmatpush1.bf16.msra.mxu0 0
    %2201 = vmatprep.subr.bf16.mxu0 0
    %2202 = vmatpush1.bf16.msra.mxu0 0
    %2203 = vmatprep.subr.bf16.mxu0 0
    %2204 = vmatpush1.bf16.msra.mxu0 0
    %2205 = vmatprep.subr.bf16.mxu0 0
    %2206 = vmatpush1.bf16.msra.mxu0 0
    %2207 = vmatprep.subr.bf16.mxu0 0
    %2208 = vmatpush1.bf16.msra.mxu0 0
    %2209 = vmatprep.mubr.bf16.mxu0 0
    %2210 = vmatmul.mubr.bf16.gmra.mrb[0].mxu0 %v2105
    %v2211 = vpop.f32.mrb[0].mxu0
    %v2212 = vadd.f32 %v2127, %v2211
    %v2213 = vpop.f32.mrb[0].mxu0
    %v2214 = vpop.f32.mrb[0].mxu0
    %v2215 = vpop.f32.mrb[0].mxu0
    %2216 = vdwg.mxu0
    %2217 = vst [vmem:[#allocation8] sm:$0xff] %v2212
    // Predicated region
    $region46: #{lstm_model_forward.1} parent=1 // pred_check
      _
    $region47: #{lstm_model_forward.1} parent=1 // pred_check_branch
      %2219 = sbr.rel (0) target = $region49
    $region48: #{lstm_model_forward.1} parent=1 // pred_region
      %s2221 = ssub.s32 128, 128
      %2222 = vsyncadd [#allocation4], %s2221
      %s2224 = sshll.u32 [#allocation8], 4
      %s2225 = int_to_ptr.vmem [resolvable:$true] %s2224
      %2227 = dma.vmem_to_hbm [thread:$0]  %s2225, 128, %s8, [#allocation4]
    $region49: #{lstm_model_forward.1} parent=1 // pred_fallthru
      _
    // Predicated region
    $region50: #{lstm_model_forward.1} parent=1 // pred_check
      _
    $region51: #{lstm_model_forward.1} parent=1 // pred_check_branch
      %2229 = sbr.rel (0) target = $region53
    $region52: #{lstm_model_forward.1} parent=1 // pred_region
      %2230 = dma.done [#allocation4], 128
    $region53: #{lstm_model_forward.1} parent=1 // pred_fallthru
      _
    %2231 = vsyncpa [#allocation3], 1
    %2232 = vsyncpa [#allocation6], 1
    %2233 = vsyncpa [#allocation4], 1

</llo_original>
